<compile_context>
chip_gen: v7x
topology: tpu7x:2x2x1
jax: 0.10.0
libtpu: 0.0.40
codegen_flags: <defaults>
</compile_context>

<pallas_src>
import functools

import jax
import jax.numpy as jnp
from jax.experimental import pallas as pl
from jax.experimental.pallas import tpu as pltpu


# ---------------------------------------------------------------------------
# Fused Pallas kernel: whole ASAP forward
# ---------------------------------------------------------------------------
def _asap_fused_kernel(
    # graph tensors
    a_ref, x_ref, s_ref, e_ref,
    # layer 1 (input_dim != hidden_dim -> projected skip)
    w1_ref, b1_ref, g1_ref, be1_ref, wp1_ref, wci1_ref, bci1_ref, wco1_ref, bco1_ref,
    # layer 2 (identity skip -- projection matmul elided)
    w2_ref, b2_ref, g2_ref, be2_ref, wci2_ref, bci2_ref, wco2_ref, bco2_ref,
    # layer 3 (identity skip -- projection matmul elided)
    w3_ref, b3_ref, g3_ref, be3_ref, wci3_ref, bci3_ref, wco3_ref, bco3_ref,
    # head: fc1 weight pre-split by input segment [p1 | p2 | p3 | eFeature]
    f1p1_ref, f1p2_ref, f1p3_ref, f1e_ref, f1b_ref, f3w_ref, f3b_ref,
    # output
    out_ref, *, eps):
    a = a_ref[...]          # [N, N] normalized adjacency (loaded once, reused 3x)
    s = s_ref[...]          # [B, N] normalized pooling matrix

    def gcn_block(x, skip_in, w, b, gamma, beta, wci, bci, wco, bco):
        # GCNConv: (A_hat @ X) @ W + b
        ax = jnp.dot(a, x, preferred_element_type=jnp.float32)
        h = jnp.dot(ax, w, preferred_element_type=jnp.float32) + b
        # BatchNorm1d (training-mode batch statistics over nodes, biased variance).
        # NOTE: the reference builds geonn.BatchNorm(hidden_dim, hidden_dim), i.e.
        #       eps == hidden_dim; that quirk is reproduced exactly via `eps`.
        mean = jnp.mean(h, axis=0, keepdims=True)
        var = jnp.mean((h - mean) ** 2, axis=0, keepdims=True)
        h = (h - mean) * jax.lax.rsqrt(var + eps)
        h = h * gamma + beta
        # ReLU
        h = jnp.maximum(h, 0.0)
        # GatedSkipConnection:
        #   z   = sigmoid(skip_in @ Wci + bci + h @ Wco + bco)
        #   out = z * h + (1 - z) * skip_in
        z = jax.nn.sigmoid(
            jnp.dot(skip_in, wci, preferred_element_type=jnp.float32) + bci
            + jnp.dot(h, wco, preferred_element_type=jnp.float32) + bco)
        out = z * h + (1.0 - z) * skip_in
        # global_mean_pool as a matmul with the normalized segment matrix
        pooled = jnp.dot(s, out, preferred_element_type=jnp.float32)
        return out, pooled

    x = x_ref[...]

    # Layer 1: skip identity must be projected (input_dim != hidden_dim).
    idp1 = jnp.dot(x, wp1_ref[...], preferred_element_type=jnp.float32)
    h1, p1 = gcn_block(x, idp1,
                       w1_ref[...], b1_ref[...], g1_ref[...], be1_ref[...],
                       wci1_ref[...], bci1_ref[...], wco1_ref[...], bco1_ref[...])

    # Layers 2 & 3: identity skip -- no projection matmul.
    h2, p2 = gcn_block(h1, h1,
                       w2_ref[...], b2_ref[...], g2_ref[...], be2_ref[...],
                       wci2_ref[...], bci2_ref[...], wco2_ref[...], bco2_ref[...])
    _, p3 = gcn_block(h2, h2,
                      w3_ref[...], b3_ref[...], g3_ref[...], be3_ref[...],
                      wci3_ref[...], bci3_ref[...], wco3_ref[...], bco3_ref[...])

    # Head: fc1(concat([p1, p2, p3, e])) written as a sum of per-segment matmuls
    # (mathematically identical, no lane-axis concatenation needed), then ReLU, fc3.
    hh = (jnp.dot(p1, f1p1_ref[...], preferred_element_type=jnp.float32)
          + jnp.dot(p2, f1p2_ref[...], preferred_element_type=jnp.float32)
          + jnp.dot(p3, f1p3_ref[...], preferred_element_type=jnp.float32)
          + jnp.dot(e_ref[...], f1e_ref[...], preferred_element_type=jnp.float32)
          + f1b_ref[...])
    hh = jnp.maximum(hh, 0.0)
    out_ref[...] = (jnp.dot(hh, f3w_ref[...], preferred_element_type=jnp.float32)
                    + f3b_ref[...])


# ---------------------------------------------------------------------------
# Wrapper
# ---------------------------------------------------------------------------
_VMEM = pl.BlockSpec(memory_space=pltpu.MemorySpace.VMEM)


def asap_forward(a_hat, x, s_norm, e_feature, params, hidden_dim):
    """Single fused pallas_call for the whole ASAP forward pass."""
    b = s_norm.shape[0]
    out_dim = params["fc3_w"].shape[1]
    eps = float(hidden_dim)  # reproduces geonn.BatchNorm(hidden_dim, hidden_dim)

    l1, l2, l3 = params["layer1"], params["layer2"], params["layer3"]
    fc1_w = params["fc1_w"]
    # Pre-split fc1 weight by the row blocks that multiply [p1 | p2 | p3 | eFeature].
    f1p1 = fc1_w[:hidden_dim]
    f1p2 = fc1_w[hidden_dim:2 * hidden_dim]
    f1p3 = fc1_w[2 * hidden_dim:3 * hidden_dim]
    f1e = fc1_w[3 * hidden_dim:]

    args = (
        a_hat, x, s_norm, e_feature,
        l1["w"], l1["b"], l1["gamma"], l1["beta"], l1["wproj"],
        l1["wci"], l1["bci"], l1["wco"], l1["bco"],
        l2["w"], l2["b"], l2["gamma"], l2["beta"],
        l2["wci"], l2["bci"], l2["wco"], l2["bco"],
        l3["w"], l3["b"], l3["gamma"], l3["beta"],
        l3["wci"], l3["bci"], l3["wco"], l3["bco"],
        f1p1, f1p2, f1p3, f1e, params["fc1_b"],
        params["fc3_w"], params["fc3_b"],
    )

    kern = functools.partial(_asap_fused_kernel, eps=eps)
    return pl.pallas_call(
        kern,
        out_shape=jax.ShapeDtypeStruct((b, out_dim), jnp.float32),
        in_specs=[_VMEM] * len(args),
        out_specs=_VMEM,
    )(*args)


# ---------------------------------------------------------------------------
# Deterministic parameter / graph construction
# ---------------------------------------------------------------------------
def make_layer_params(key, in_dim, hid_dim):
    ks = jax.random.split(key, 4)
    p = dict(
        w=0.1 * jax.random.normal(ks[0], (in_dim, hid_dim), jnp.float32),
        b=jnp.zeros((1, hid_dim), jnp.float32),
        gamma=jnp.ones((1, hid_dim), jnp.float32),
        beta=jnp.zeros((1, hid_dim), jnp.float32),
        wci=0.1 * jax.random.normal(ks[1], (hid_dim, hid_dim), jnp.float32),
        bci=jnp.zeros((1, hid_dim), jnp.float32),
        wco=0.1 * jax.random.normal(ks[2], (hid_dim, hid_dim), jnp.float32),
        bco=jnp.zeros((1, hid_dim), jnp.float32),
    )
    if in_dim != hid_dim:
        # GatedSkipConnection only projects the identity when dims differ.
        p["wproj"] = 0.1 * jax.random.normal(ks[3], (in_dim, hid_dim), jnp.float32)
    return p


if __name__ == "__main__":
    # Small synthetic problem consistent with the module's forward.
    N = 16            # nodes (2 graphs x 8 nodes)
    B = 2             # graphs in batch
    INPUT_DIM = 8
    HIDDEN_DIM = 32
    EX_DIM = 4
    OUT_DIM = 2

    key = jax.random.PRNGKey(0)
    k_x, k_e, k1, k2, k3, k_fc1, k_fc3 = jax.random.split(key, 7)

    # Node features g.x  [N, INPUT_DIM]
    x = jax.random.normal(k_x, (N, INPUT_DIM), jnp.float32)
    # Extra graph-level features g.eFeature  [B, EX_DIM]
    e_feature = jax.random.normal(k_e, (B, EX_DIM), jnp.float32)

    # Deterministic symmetric edge_index: a ring inside each graph (both directions).
    src, dst = [], []
    for n0 in (0, 8):
        for i in range(8):
            a, b = n0 + i, n0 + (i + 1) % 8
            src += [a, b]
            dst += [b, a]
    A = jnp.zeros((N, N), jnp.float32).at[jnp.array(dst), jnp.array(src)].set(1.0)
    A_tilde = A + jnp.eye(N, dtype=jnp.float32)            # add self loops
    deg = A_tilde.sum(axis=1)
    dinv = 1.0 / jnp.sqrt(deg)
    a_hat = A_tilde * dinv[:, None] * dinv[None, :]         # D^-1/2 (A+I) D^-1/2

    # g.batch -> normalized pooling matrix S_norm [B, N]
    batch = jnp.array([0] * 8 + [1] * 8)
    seg = (batch[None, :] == jnp.arange(B)[:, None]).astype(jnp.float32)
    s_norm = seg / seg.sum(axis=1, keepdims=True)

    params = dict(
        layer1=make_layer_params(k1, INPUT_DIM, HIDDEN_DIM),
        layer2=make_layer_params(k2, HIDDEN_DIM, HIDDEN_DIM),
        layer3=make_layer_params(k3, HIDDEN_DIM, HIDDEN_DIM),
        fc1_w=0.1 * jax.random.normal(k_fc1, (HIDDEN_DIM * 3 + EX_DIM, HIDDEN_DIM),
                                      jnp.float32),
        fc1_b=jnp.zeros((1, HIDDEN_DIM), jnp.float32),
        fc3_w=0.1 * jax.random.normal(k_fc3, (HIDDEN_DIM, OUT_DIM), jnp.float32),
        fc3_b=jnp.zeros((1, OUT_DIM), jnp.float32),
    )

    out = asap_forward(a_hat, x, s_norm, e_feature, params, HIDDEN_DIM)
    out = jax.block_until_ready(out)
    assert out.shape == (B, OUT_DIM)
    print("KERNEL_OK")
</pallas_src>

<mosaic_0001>
module attributes {stable_mosaic.version = 11 : i64} {
  func.func @_asap_fused_kernel(%arg0: memref<16x16xf32, #tpu.memory_space<vmem>>, %arg1: memref<16x8xf32, #tpu.memory_space<vmem>>, %arg2: memref<2x16xf32, #tpu.memory_space<vmem>>, %arg3: memref<2x4xf32, #tpu.memory_space<vmem>>, %arg4: memref<8x32xf32, #tpu.memory_space<vmem>>, %arg5: memref<1x32xf32, #tpu.memory_space<vmem>>, %arg6: memref<1x32xf32, #tpu.memory_space<vmem>>, %arg7: memref<1x32xf32, #tpu.memory_space<vmem>>, %arg8: memref<8x32xf32, #tpu.memory_space<vmem>>, %arg9: memref<32x32xf32, #tpu.memory_space<vmem>>, %arg10: memref<1x32xf32, #tpu.memory_space<vmem>>, %arg11: memref<32x32xf32, #tpu.memory_space<vmem>>, %arg12: memref<1x32xf32, #tpu.memory_space<vmem>>, %arg13: memref<32x32xf32, #tpu.memory_space<vmem>>, %arg14: memref<1x32xf32, #tpu.memory_space<vmem>>, %arg15: memref<1x32xf32, #tpu.memory_space<vmem>>, %arg16: memref<1x32xf32, #tpu.memory_space<vmem>>, %arg17: memref<32x32xf32, #tpu.memory_space<vmem>>, %arg18: memref<1x32xf32, #tpu.memory_space<vmem>>, %arg19: memref<32x32xf32, #tpu.memory_space<vmem>>, %arg20: memref<1x32xf32, #tpu.memory_space<vmem>>, %arg21: memref<32x32xf32, #tpu.memory_space<vmem>>, %arg22: memref<1x32xf32, #tpu.memory_space<vmem>>, %arg23: memref<1x32xf32, #tpu.memory_space<vmem>>, %arg24: memref<1x32xf32, #tpu.memory_space<vmem>>, %arg25: memref<32x32xf32, #tpu.memory_space<vmem>>, %arg26: memref<1x32xf32, #tpu.memory_space<vmem>>, %arg27: memref<32x32xf32, #tpu.memory_space<vmem>>, %arg28: memref<1x32xf32, #tpu.memory_space<vmem>>, %arg29: memref<32x32xf32, #tpu.memory_space<vmem>>, %arg30: memref<32x32xf32, #tpu.memory_space<vmem>>, %arg31: memref<32x32xf32, #tpu.memory_space<vmem>>, %arg32: memref<4x32xf32, #tpu.memory_space<vmem>>, %arg33: memref<1x32xf32, #tpu.memory_space<vmem>>, %arg34: memref<32x2xf32, #tpu.memory_space<vmem>>, %arg35: memref<1x2xf32, #tpu.memory_space<vmem>>, %arg36: memref<2x2xf32, #tpu.memory_space<vmem>>) attributes {dimension_semantics = [], scalar_prefetch = 0 : i64, scratch_operands = 0 : i64, tpu.core_type = #tpu.core_type<tc>} {
    %c0 = arith.constant 0 : index
    %c0_0 = arith.constant 0 : index
    %0 = vector.load %arg0[%c0, %c0_0] : memref<16x16xf32, #tpu.memory_space<vmem>>, vector<16x16xf32>
    %c0_1 = arith.constant 0 : index
    %c0_2 = arith.constant 0 : index
    %1 = vector.load %arg2[%c0_1, %c0_2] : memref<2x16xf32, #tpu.memory_space<vmem>>, vector<2x16xf32>
    %c0_3 = arith.constant 0 : index
    %c0_4 = arith.constant 0 : index
    %2 = vector.load %arg1[%c0_3, %c0_4] : memref<16x8xf32, #tpu.memory_space<vmem>>, vector<16x8xf32>
    %c0_5 = arith.constant 0 : index
    %c0_6 = arith.constant 0 : index
    %3 = vector.load %arg8[%c0_5, %c0_6] : memref<8x32xf32, #tpu.memory_space<vmem>>, vector<8x32xf32>
    %cst = arith.constant dense<0.000000e+00> : vector<16x32xf32>
    %4 = tpu.matmul %2, %3, %cst {dimension_numbers = #tpu.dot_dimension_numbers<[1], [0], [0], [1], [0, 0, 1, 1], [], []>} : vector<16x8xf32>, vector<8x32xf32>, vector<16x32xf32> -> vector<16x32xf32>
    %c0_7 = arith.constant 0 : index
    %c0_8 = arith.constant 0 : index
    %5 = vector.load %arg4[%c0_7, %c0_8] : memref<8x32xf32, #tpu.memory_space<vmem>>, vector<8x32xf32>
    %c0_9 = arith.constant 0 : index
    %c0_10 = arith.constant 0 : index
    %6 = vector.load %arg5[%c0_9, %c0_10] : memref<1x32xf32, #tpu.memory_space<vmem>>, vector<1x32xf32>
    %c0_11 = arith.constant 0 : index
    %c0_12 = arith.constant 0 : index
    %7 = vector.load %arg6[%c0_11, %c0_12] : memref<1x32xf32, #tpu.memory_space<vmem>>, vector<1x32xf32>
    %c0_13 = arith.constant 0 : index
    %c0_14 = arith.constant 0 : index
    %8 = vector.load %arg7[%c0_13, %c0_14] : memref<1x32xf32, #tpu.memory_space<vmem>>, vector<1x32xf32>
    %c0_15 = arith.constant 0 : index
    %c0_16 = arith.constant 0 : index
    %9 = vector.load %arg9[%c0_15, %c0_16] : memref<32x32xf32, #tpu.memory_space<vmem>>, vector<32x32xf32>
    %c0_17 = arith.constant 0 : index
    %c0_18 = arith.constant 0 : index
    %10 = vector.load %arg10[%c0_17, %c0_18] : memref<1x32xf32, #tpu.memory_space<vmem>>, vector<1x32xf32>
    %c0_19 = arith.constant 0 : index
    %c0_20 = arith.constant 0 : index
    %11 = vector.load %arg11[%c0_19, %c0_20] : memref<32x32xf32, #tpu.memory_space<vmem>>, vector<32x32xf32>
    %c0_21 = arith.constant 0 : index
    %c0_22 = arith.constant 0 : index
    %12 = vector.load %arg12[%c0_21, %c0_22] : memref<1x32xf32, #tpu.memory_space<vmem>>, vector<1x32xf32>
    %cst_23 = arith.constant dense<0.000000e+00> : vector<16x8xf32>
    %13 = tpu.matmul %0, %2, %cst_23 {dimension_numbers = #tpu.dot_dimension_numbers<[1], [0], [0], [1], [0, 0, 1, 1], [], []>} : vector<16x16xf32>, vector<16x8xf32>, vector<16x8xf32> -> vector<16x8xf32>
    %cst_24 = arith.constant dense<0.000000e+00> : vector<16x32xf32>
    %14 = tpu.matmul %13, %5, %cst_24 {dimension_numbers = #tpu.dot_dimension_numbers<[1], [0], [0], [1], [0, 0, 1, 1], [], []>} : vector<16x8xf32>, vector<8x32xf32>, vector<16x32xf32> -> vector<16x32xf32>
    %15 = vector.broadcast %6 : vector<1x32xf32> to vector<16x32xf32>
    %16 = arith.addf %14, %15 : vector<16x32xf32>
    %cst_25 = arith.constant dense<0.000000e+00> : vector<32xf32>
    %17 = vector.multi_reduction <add>, %16, %cst_25 [0] : vector<16x32xf32> to vector<32xf32>
    %18 = vector.shape_cast %17 : vector<32xf32> to vector<1x32xf32>
    %cst_26 = arith.constant 1.600000e+01 : f32
    %19 = vector.broadcast %cst_26 : f32 to vector<1x32xf32>
    %20 = arith.divf %18, %19 : vector<1x32xf32>
    %21 = vector.broadcast %20 : vector<1x32xf32> to vector<16x32xf32>
    %22 = arith.subf %16, %21 : vector<16x32xf32>
    %23 = arith.mulf %22, %22 : vector<16x32xf32>
    %cst_27 = arith.constant dense<0.000000e+00> : vector<32xf32>
    %24 = vector.multi_reduction <add>, %23, %cst_27 [0] : vector<16x32xf32> to vector<32xf32>
    %25 = vector.shape_cast %24 : vector<32xf32> to vector<1x32xf32>
    %cst_28 = arith.constant 1.600000e+01 : f32
    %26 = vector.broadcast %cst_28 : f32 to vector<1x32xf32>
    %27 = arith.divf %25, %26 : vector<1x32xf32>
    %28 = vector.broadcast %20 : vector<1x32xf32> to vector<16x32xf32>
    %29 = arith.subf %16, %28 : vector<16x32xf32>
    %cst_29 = arith.constant 3.200000e+01 : f32
    %30 = vector.broadcast %cst_29 : f32 to vector<1x32xf32>
    %31 = arith.addf %27, %30 : vector<1x32xf32>
    %32 = math.rsqrt %31 : vector<1x32xf32>
    %33 = vector.broadcast %32 : vector<1x32xf32> to vector<16x32xf32>
    %34 = arith.mulf %29, %33 : vector<16x32xf32>
    %35 = vector.broadcast %7 : vector<1x32xf32> to vector<16x32xf32>
    %36 = arith.mulf %34, %35 : vector<16x32xf32>
    %37 = vector.broadcast %8 : vector<1x32xf32> to vector<16x32xf32>
    %38 = arith.addf %36, %37 : vector<16x32xf32>
    %cst_30 = arith.constant 0.000000e+00 : f32
    %39 = vector.broadcast %cst_30 : f32 to vector<16x32xf32>
    %40 = arith.maximumf %38, %39 : vector<16x32xf32>
    %cst_31 = arith.constant dense<0.000000e+00> : vector<16x32xf32>
    %41 = tpu.matmul %4, %9, %cst_31 {dimension_numbers = #tpu.dot_dimension_numbers<[1], [0], [0], [1], [0, 0, 1, 1], [], []>} : vector<16x32xf32>, vector<32x32xf32>, vector<16x32xf32> -> vector<16x32xf32>
    %42 = vector.broadcast %10 : vector<1x32xf32> to vector<16x32xf32>
    %43 = arith.addf %41, %42 : vector<16x32xf32>
    %cst_32 = arith.constant dense<0.000000e+00> : vector<16x32xf32>
    %44 = tpu.matmul %40, %11, %cst_32 {dimension_numbers = #tpu.dot_dimension_numbers<[1], [0], [0], [1], [0, 0, 1, 1], [], []>} : vector<16x32xf32>, vector<32x32xf32>, vector<16x32xf32> -> vector<16x32xf32>
    %45 = arith.addf %43, %44 : vector<16x32xf32>
    %46 = vector.broadcast %12 : vector<1x32xf32> to vector<16x32xf32>
    %47 = arith.addf %45, %46 : vector<16x32xf32>
    %48 = arith.negf %47 : vector<16x32xf32>
    %49 = math.exp %48 : vector<16x32xf32>
    %cst_33 = arith.constant 1.000000e+00 : f32
    %50 = vector.broadcast %cst_33 : f32 to vector<16x32xf32>
    %51 = arith.addf %50, %49 : vector<16x32xf32>
    %52 = arith.divf %50, %51 : vector<16x32xf32>
    %53 = arith.mulf %52, %40 : vector<16x32xf32>
    %cst_34 = arith.constant 1.000000e+00 : f32
    %54 = vector.broadcast %cst_34 : f32 to vector<16x32xf32>
    %55 = arith.subf %54, %52 : vector<16x32xf32>
    %56 = arith.mulf %55, %4 : vector<16x32xf32>
    %57 = arith.addf %53, %56 : vector<16x32xf32>
    %cst_35 = arith.constant dense<0.000000e+00> : vector<2x32xf32>
    %58 = tpu.matmul %1, %57, %cst_35 {dimension_numbers = #tpu.dot_dimension_numbers<[1], [0], [0], [1], [0, 0, 1, 1], [], []>} : vector<2x16xf32>, vector<16x32xf32>, vector<2x32xf32> -> vector<2x32xf32>
    %c0_36 = arith.constant 0 : index
    %c0_37 = arith.constant 0 : index
    %59 = vector.load %arg13[%c0_36, %c0_37] : memref<32x32xf32, #tpu.memory_space<vmem>>, vector<32x32xf32>
    %c0_38 = arith.constant 0 : index
    %c0_39 = arith.constant 0 : index
    %60 = vector.load %arg14[%c0_38, %c0_39] : memref<1x32xf32, #tpu.memory_space<vmem>>, vector<1x32xf32>
    %c0_40 = arith.constant 0 : index
    %c0_41 = arith.constant 0 : index
    %61 = vector.load %arg15[%c0_40, %c0_41] : memref<1x32xf32, #tpu.memory_space<vmem>>, vector<1x32xf32>
    %c0_42 = arith.constant 0 : index
    %c0_43 = arith.constant 0 : index
    %62 = vector.load %arg16[%c0_42, %c0_43] : memref<1x32xf32, #tpu.memory_space<vmem>>, vector<1x32xf32>
    %c0_44 = arith.constant 0 : index
    %c0_45 = arith.constant 0 : index
    %63 = vector.load %arg17[%c0_44, %c0_45] : memref<32x32xf32, #tpu.memory_space<vmem>>, vector<32x32xf32>
    %c0_46 = arith.constant 0 : index
    %c0_47 = arith.constant 0 : index
    %64 = vector.load %arg18[%c0_46, %c0_47] : memref<1x32xf32, #tpu.memory_space<vmem>>, vector<1x32xf32>
    %c0_48 = arith.constant 0 : index
    %c0_49 = arith.constant 0 : index
    %65 = vector.load %arg19[%c0_48, %c0_49] : memref<32x32xf32, #tpu.memory_space<vmem>>, vector<32x32xf32>
    %c0_50 = arith.constant 0 : index
    %c0_51 = arith.constant 0 : index
    %66 = vector.load %arg20[%c0_50, %c0_51] : memref<1x32xf32, #tpu.memory_space<vmem>>, vector<1x32xf32>
    %cst_52 = arith.constant dense<0.000000e+00> : vector<16x32xf32>
    %67 = tpu.matmul %0, %57, %cst_52 {dimension_numbers = #tpu.dot_dimension_numbers<[1], [0], [0], [1], [0, 0, 1, 1], [], []>} : vector<16x16xf32>, vector<16x32xf32>, vector<16x32xf32> -> vector<16x32xf32>
    %cst_53 = arith.constant dense<0.000000e+00> : vector<16x32xf32>
    %68 = tpu.matmul %67, %59, %cst_53 {dimension_numbers = #tpu.dot_dimension_numbers<[1], [0], [0], [1], [0, 0, 1, 1], [], []>} : vector<16x32xf32>, vector<32x32xf32>, vector<16x32xf32> -> vector<16x32xf32>
    %69 = vector.broadcast %60 : vector<1x32xf32> to vector<16x32xf32>
    %70 = arith.addf %68, %69 : vector<16x32xf32>
    %cst_54 = arith.constant dense<0.000000e+00> : vector<32xf32>
    %71 = vector.multi_reduction <add>, %70, %cst_54 [0] : vector<16x32xf32> to vector<32xf32>
    %72 = vector.shape_cast %71 : vector<32xf32> to vector<1x32xf32>
    %cst_55 = arith.constant 1.600000e+01 : f32
    %73 = vector.broadcast %cst_55 : f32 to vector<1x32xf32>
    %74 = arith.divf %72, %73 : vector<1x32xf32>
    %75 = vector.broadcast %74 : vector<1x32xf32> to vector<16x32xf32>
    %76 = arith.subf %70, %75 : vector<16x32xf32>
    %77 = arith.mulf %76, %76 : vector<16x32xf32>
    %cst_56 = arith.constant dense<0.000000e+00> : vector<32xf32>
    %78 = vector.multi_reduction <add>, %77, %cst_56 [0] : vector<16x32xf32> to vector<32xf32>
    %79 = vector.shape_cast %78 : vector<32xf32> to vector<1x32xf32>
    %cst_57 = arith.constant 1.600000e+01 : f32
    %80 = vector.broadcast %cst_57 : f32 to vector<1x32xf32>
    %81 = arith.divf %79, %80 : vector<1x32xf32>
    %82 = vector.broadcast %74 : vector<1x32xf32> to vector<16x32xf32>
    %83 = arith.subf %70, %82 : vector<16x32xf32>
    %cst_58 = arith.constant 3.200000e+01 : f32
    %84 = vector.broadcast %cst_58 : f32 to vector<1x32xf32>
    %85 = arith.addf %81, %84 : vector<1x32xf32>
    %86 = math.rsqrt %85 : vector<1x32xf32>
    %87 = vector.broadcast %86 : vector<1x32xf32> to vector<16x32xf32>
    %88 = arith.mulf %83, %87 : vector<16x32xf32>
    %89 = vector.broadcast %61 : vector<1x32xf32> to vector<16x32xf32>
    %90 = arith.mulf %88, %89 : vector<16x32xf32>
    %91 = vector.broadcast %62 : vector<1x32xf32> to vector<16x32xf32>
    %92 = arith.addf %90, %91 : vector<16x32xf32>
    %cst_59 = arith.constant 0.000000e+00 : f32
    %93 = vector.broadcast %cst_59 : f32 to vector<16x32xf32>
    %94 = arith.maximumf %92, %93 : vector<16x32xf32>
    %cst_60 = arith.constant dense<0.000000e+00> : vector<16x32xf32>
    %95 = tpu.matmul %57, %63, %cst_60 {dimension_numbers = #tpu.dot_dimension_numbers<[1], [0], [0], [1], [0, 0, 1, 1], [], []>} : vector<16x32xf32>, vector<32x32xf32>, vector<16x32xf32> -> vector<16x32xf32>
    %96 = vector.broadcast %64 : vector<1x32xf32> to vector<16x32xf32>
    %97 = arith.addf %95, %96 : vector<16x32xf32>
    %cst_61 = arith.constant dense<0.000000e+00> : vector<16x32xf32>
    %98 = tpu.matmul %94, %65, %cst_61 {dimension_numbers = #tpu.dot_dimension_numbers<[1], [0], [0], [1], [0, 0, 1, 1], [], []>} : vector<16x32xf32>, vector<32x32xf32>, vector<16x32xf32> -> vector<16x32xf32>
    %99 = arith.addf %97, %98 : vector<16x32xf32>
    %100 = vector.broadcast %66 : vector<1x32xf32> to vector<16x32xf32>
    %101 = arith.addf %99, %100 : vector<16x32xf32>
    %102 = arith.negf %101 : vector<16x32xf32>
    %103 = math.exp %102 : vector<16x32xf32>
    %cst_62 = arith.constant 1.000000e+00 : f32
    %104 = vector.broadcast %cst_62 : f32 to vector<16x32xf32>
    %105 = arith.addf %104, %103 : vector<16x32xf32>
    %106 = arith.divf %104, %105 : vector<16x32xf32>
    %107 = arith.mulf %106, %94 : vector<16x32xf32>
    %cst_63 = arith.constant 1.000000e+00 : f32
    %108 = vector.broadcast %cst_63 : f32 to vector<16x32xf32>
    %109 = arith.subf %108, %106 : vector<16x32xf32>
    %110 = arith.mulf %109, %57 : vector<16x32xf32>
    %111 = arith.addf %107, %110 : vector<16x32xf32>
    %cst_64 = arith.constant dense<0.000000e+00> : vector<2x32xf32>
    %112 = tpu.matmul %1, %111, %cst_64 {dimension_numbers = #tpu.dot_dimension_numbers<[1], [0], [0], [1], [0, 0, 1, 1], [], []>} : vector<2x16xf32>, vector<16x32xf32>, vector<2x32xf32> -> vector<2x32xf32>
    %c0_65 = arith.constant 0 : index
    %c0_66 = arith.constant 0 : index
    %113 = vector.load %arg21[%c0_65, %c0_66] : memref<32x32xf32, #tpu.memory_space<vmem>>, vector<32x32xf32>
    %c0_67 = arith.constant 0 : index
    %c0_68 = arith.constant 0 : index
    %114 = vector.load %arg22[%c0_67, %c0_68] : memref<1x32xf32, #tpu.memory_space<vmem>>, vector<1x32xf32>
    %c0_69 = arith.constant 0 : index
    %c0_70 = arith.constant 0 : index
    %115 = vector.load %arg23[%c0_69, %c0_70] : memref<1x32xf32, #tpu.memory_space<vmem>>, vector<1x32xf32>
    %c0_71 = arith.constant 0 : index
    %c0_72 = arith.constant 0 : index
    %116 = vector.load %arg24[%c0_71, %c0_72] : memref<1x32xf32, #tpu.memory_space<vmem>>, vector<1x32xf32>
    %c0_73 = arith.constant 0 : index
    %c0_74 = arith.constant 0 : index
    %117 = vector.load %arg25[%c0_73, %c0_74] : memref<32x32xf32, #tpu.memory_space<vmem>>, vector<32x32xf32>
    %c0_75 = arith.constant 0 : index
    %c0_76 = arith.constant 0 : index
    %118 = vector.load %arg26[%c0_75, %c0_76] : memref<1x32xf32, #tpu.memory_space<vmem>>, vector<1x32xf32>
    %c0_77 = arith.constant 0 : index
    %c0_78 = arith.constant 0 : index
    %119 = vector.load %arg27[%c0_77, %c0_78] : memref<32x32xf32, #tpu.memory_space<vmem>>, vector<32x32xf32>
    %c0_79 = arith.constant 0 : index
    %c0_80 = arith.constant 0 : index
    %120 = vector.load %arg28[%c0_79, %c0_80] : memref<1x32xf32, #tpu.memory_space<vmem>>, vector<1x32xf32>
    %cst_81 = arith.constant dense<0.000000e+00> : vector<16x32xf32>
    %121 = tpu.matmul %0, %111, %cst_81 {dimension_numbers = #tpu.dot_dimension_numbers<[1], [0], [0], [1], [0, 0, 1, 1], [], []>} : vector<16x16xf32>, vector<16x32xf32>, vector<16x32xf32> -> vector<16x32xf32>
    %cst_82 = arith.constant dense<0.000000e+00> : vector<16x32xf32>
    %122 = tpu.matmul %121, %113, %cst_82 {dimension_numbers = #tpu.dot_dimension_numbers<[1], [0], [0], [1], [0, 0, 1, 1], [], []>} : vector<16x32xf32>, vector<32x32xf32>, vector<16x32xf32> -> vector<16x32xf32>
    %123 = vector.broadcast %114 : vector<1x32xf32> to vector<16x32xf32>
    %124 = arith.addf %122, %123 : vector<16x32xf32>
    %cst_83 = arith.constant dense<0.000000e+00> : vector<32xf32>
    %125 = vector.multi_reduction <add>, %124, %cst_83 [0] : vector<16x32xf32> to vector<32xf32>
    %126 = vector.shape_cast %125 : vector<32xf32> to vector<1x32xf32>
    %cst_84 = arith.constant 1.600000e+01 : f32
    %127 = vector.broadcast %cst_84 : f32 to vector<1x32xf32>
    %128 = arith.divf %126, %127 : vector<1x32xf32>
    %129 = vector.broadcast %128 : vector<1x32xf32> to vector<16x32xf32>
    %130 = arith.subf %124, %129 : vector<16x32xf32>
    %131 = arith.mulf %130, %130 : vector<16x32xf32>
    %cst_85 = arith.constant dense<0.000000e+00> : vector<32xf32>
    %132 = vector.multi_reduction <add>, %131, %cst_85 [0] : vector<16x32xf32> to vector<32xf32>
    %133 = vector.shape_cast %132 : vector<32xf32> to vector<1x32xf32>
    %cst_86 = arith.constant 1.600000e+01 : f32
    %134 = vector.broadcast %cst_86 : f32 to vector<1x32xf32>
    %135 = arith.divf %133, %134 : vector<1x32xf32>
    %136 = vector.broadcast %128 : vector<1x32xf32> to vector<16x32xf32>
    %137 = arith.subf %124, %136 : vector<16x32xf32>
    %cst_87 = arith.constant 3.200000e+01 : f32
    %138 = vector.broadcast %cst_87 : f32 to vector<1x32xf32>
    %139 = arith.addf %135, %138 : vector<1x32xf32>
    %140 = math.rsqrt %139 : vector<1x32xf32>
    %141 = vector.broadcast %140 : vector<1x32xf32> to vector<16x32xf32>
    %142 = arith.mulf %137, %141 : vector<16x32xf32>
    %143 = vector.broadcast %115 : vector<1x32xf32> to vector<16x32xf32>
    %144 = arith.mulf %142, %143 : vector<16x32xf32>
    %145 = vector.broadcast %116 : vector<1x32xf32> to vector<16x32xf32>
    %146 = arith.addf %144, %145 : vector<16x32xf32>
    %cst_88 = arith.constant 0.000000e+00 : f32
    %147 = vector.broadcast %cst_88 : f32 to vector<16x32xf32>
    %148 = arith.maximumf %146, %147 : vector<16x32xf32>
    %cst_89 = arith.constant dense<0.000000e+00> : vector<16x32xf32>
    %149 = tpu.matmul %111, %117, %cst_89 {dimension_numbers = #tpu.dot_dimension_numbers<[1], [0], [0], [1], [0, 0, 1, 1], [], []>} : vector<16x32xf32>, vector<32x32xf32>, vector<16x32xf32> -> vector<16x32xf32>
    %150 = vector.broadcast %118 : vector<1x32xf32> to vector<16x32xf32>
    %151 = arith.addf %149, %150 : vector<16x32xf32>
    %cst_90 = arith.constant dense<0.000000e+00> : vector<16x32xf32>
    %152 = tpu.matmul %148, %119, %cst_90 {dimension_numbers = #tpu.dot_dimension_numbers<[1], [0], [0], [1], [0, 0, 1, 1], [], []>} : vector<16x32xf32>, vector<32x32xf32>, vector<16x32xf32> -> vector<16x32xf32>
    %153 = arith.addf %151, %152 : vector<16x32xf32>
    %154 = vector.broadcast %120 : vector<1x32xf32> to vector<16x32xf32>
    %155 = arith.addf %153, %154 : vector<16x32xf32>
    %156 = arith.negf %155 : vector<16x32xf32>
    %157 = math.exp %156 : vector<16x32xf32>
    %cst_91 = arith.constant 1.000000e+00 : f32
    %158 = vector.broadcast %cst_91 : f32 to vector<16x32xf32>
    %159 = arith.addf %158, %157 : vector<16x32xf32>
    %160 = arith.divf %158, %159 : vector<16x32xf32>
    %161 = arith.mulf %160, %148 : vector<16x32xf32>
    %cst_92 = arith.constant 1.000000e+00 : f32
    %162 = vector.broadcast %cst_92 : f32 to vector<16x32xf32>
    %163 = arith.subf %162, %160 : vector<16x32xf32>
    %164 = arith.mulf %163, %111 : vector<16x32xf32>
    %165 = arith.addf %161, %164 : vector<16x32xf32>
    %cst_93 = arith.constant dense<0.000000e+00> : vector<2x32xf32>
    %166 = tpu.matmul %1, %165, %cst_93 {dimension_numbers = #tpu.dot_dimension_numbers<[1], [0], [0], [1], [0, 0, 1, 1], [], []>} : vector<2x16xf32>, vector<16x32xf32>, vector<2x32xf32> -> vector<2x32xf32>
    %c0_94 = arith.constant 0 : index
    %c0_95 = arith.constant 0 : index
    %167 = vector.load %arg29[%c0_94, %c0_95] : memref<32x32xf32, #tpu.memory_space<vmem>>, vector<32x32xf32>
    %cst_96 = arith.constant dense<0.000000e+00> : vector<2x32xf32>
    %168 = tpu.matmul %58, %167, %cst_96 {dimension_numbers = #tpu.dot_dimension_numbers<[1], [0], [0], [1], [0, 0, 1, 1], [], []>} : vector<2x32xf32>, vector<32x32xf32>, vector<2x32xf32> -> vector<2x32xf32>
    %c0_97 = arith.constant 0 : index
    %c0_98 = arith.constant 0 : index
    %169 = vector.load %arg30[%c0_97, %c0_98] : memref<32x32xf32, #tpu.memory_space<vmem>>, vector<32x32xf32>
    %cst_99 = arith.constant dense<0.000000e+00> : vector<2x32xf32>
    %170 = tpu.matmul %112, %169, %cst_99 {dimension_numbers = #tpu.dot_dimension_numbers<[1], [0], [0], [1], [0, 0, 1, 1], [], []>} : vector<2x32xf32>, vector<32x32xf32>, vector<2x32xf32> -> vector<2x32xf32>
    %171 = arith.addf %168, %170 : vector<2x32xf32>
    %c0_100 = arith.constant 0 : index
    %c0_101 = arith.constant 0 : index
    %172 = vector.load %arg31[%c0_100, %c0_101] : memref<32x32xf32, #tpu.memory_space<vmem>>, vector<32x32xf32>
    %cst_102 = arith.constant dense<0.000000e+00> : vector<2x32xf32>
    %173 = tpu.matmul %166, %172, %cst_102 {dimension_numbers = #tpu.dot_dimension_numbers<[1], [0], [0], [1], [0, 0, 1, 1], [], []>} : vector<2x32xf32>, vector<32x32xf32>, vector<2x32xf32> -> vector<2x32xf32>
    %174 = arith.addf %171, %173 : vector<2x32xf32>
    %c0_103 = arith.constant 0 : index
    %c0_104 = arith.constant 0 : index
    %175 = vector.load %arg3[%c0_103, %c0_104] : memref<2x4xf32, #tpu.memory_space<vmem>>, vector<2x4xf32>
    %c0_105 = arith.constant 0 : index
    %c0_106 = arith.constant 0 : index
    %176 = vector.load %arg32[%c0_105, %c0_106] : memref<4x32xf32, #tpu.memory_space<vmem>>, vector<4x32xf32>
    %cst_107 = arith.constant dense<0.000000e+00> : vector<2x32xf32>
    %177 = tpu.matmul %175, %176, %cst_107 {dimension_numbers = #tpu.dot_dimension_numbers<[1], [0], [0], [1], [0, 0, 1, 1], [], []>} : vector<2x4xf32>, vector<4x32xf32>, vector<2x32xf32> -> vector<2x32xf32>
    %178 = arith.addf %174, %177 : vector<2x32xf32>
    %c0_108 = arith.constant 0 : index
    %c0_109 = arith.constant 0 : index
    %179 = vector.load %arg33[%c0_108, %c0_109] : memref<1x32xf32, #tpu.memory_space<vmem>>, vector<1x32xf32>
    %180 = vector.broadcast %179 : vector<1x32xf32> to vector<2x32xf32>
    %181 = arith.addf %178, %180 : vector<2x32xf32>
    %cst_110 = arith.constant 0.000000e+00 : f32
    %182 = vector.broadcast %cst_110 : f32 to vector<2x32xf32>
    %183 = arith.maximumf %181, %182 : vector<2x32xf32>
    %c0_111 = arith.constant 0 : index
    %c0_112 = arith.constant 0 : index
    %184 = vector.load %arg34[%c0_111, %c0_112] : memref<32x2xf32, #tpu.memory_space<vmem>>, vector<32x2xf32>
    %cst_113 = arith.constant dense<0.000000e+00> : vector<2x2xf32>
    %185 = tpu.matmul %183, %184, %cst_113 {dimension_numbers = #tpu.dot_dimension_numbers<[1], [0], [0], [1], [0, 0, 1, 1], [], []>} : vector<2x32xf32>, vector<32x2xf32>, vector<2x2xf32> -> vector<2x2xf32>
    %c0_114 = arith.constant 0 : index
    %c0_115 = arith.constant 0 : index
    %186 = vector.load %arg35[%c0_114, %c0_115] : memref<1x2xf32, #tpu.memory_space<vmem>>, vector<1x2xf32>
    %187 = vector.broadcast %186 : vector<1x2xf32> to vector<2x2xf32>
    %188 = arith.addf %185, %187 : vector<2x2xf32>
    %c0_116 = arith.constant 0 : index
    %c0_117 = arith.constant 0 : index
    %189 = vector.load %arg36[%c0_116, %c0_117] : memref<2x2xf32, #tpu.memory_space<vmem>>, vector<2x2xf32>
    tpu.vector_store %arg36[%c0_116, %c0_117], %188 {strides = array<i32>} : memref<2x2xf32, #tpu.memory_space<vmem>>, vector<2x2xf32>,
    return
  }
}

</mosaic_0001>

<llo_original>
// kernel: tpu_custom_call.1
$region0: #{tpu_custom_call.1}
  #allocation0 [shape = 'u32[]', space=smem, size = 0x4, offset = 0x4, fixed_abs, tag = 'smem constant byte address 0x4 - core index']
  #allocation1 [shape = 'u32[144,128]{1,0:T(1,128)}', space=vmem, size = 0x12000, scoped, tag = 'internal scratch']
  %s0 = inlined_call_operand.smem [shape: u32[37], index: -1, kind: input, shape index: {}]
  %s1 = sld [smem:[%s0]]
  %s2 = scalar_lea.smem %s0, 1
  %s3 = sld [smem:[%s2]]
  %s4 = scalar_lea.smem %s0, 2
  %s5 = sld [smem:[%s4]]
  %s6 = scalar_lea.smem %s0, 3
  %s7 = sld [smem:[%s6]]
  %s8 = scalar_lea.smem %s0, 4
  %s9 = sld [smem:[%s8]]
  %s10 = scalar_lea.smem %s0, 5
  %s11 = sld [smem:[%s10]]
  %s12 = scalar_lea.smem %s0, 6
  %s13 = sld [smem:[%s12]]
  %s14 = scalar_lea.smem %s0, 7
  %s15 = sld [smem:[%s14]]
  %s16 = scalar_lea.smem %s0, 8
  %s17 = sld [smem:[%s16]]
  %s18 = scalar_lea.smem %s0, 9
  %s19 = sld [smem:[%s18]]
  %s20 = scalar_lea.smem %s0, 10
  %s21 = sld [smem:[%s20]]
  %s22 = scalar_lea.smem %s0, 11
  %s23 = sld [smem:[%s22]]
  %s24 = scalar_lea.smem %s0, 12
  %s25 = sld [smem:[%s24]]
  %s26 = scalar_lea.smem %s0, 13
  %s27 = sld [smem:[%s26]]
  %s28 = scalar_lea.smem %s0, 14
  %s29 = sld [smem:[%s28]]
  %s30 = scalar_lea.smem %s0, 15
  %s31 = sld [smem:[%s30]]
  %s32 = scalar_lea.smem %s0, 16
  %s33 = sld [smem:[%s32]]
  %s34 = scalar_lea.smem %s0, 17
  %s35 = sld [smem:[%s34]]
  %s36 = scalar_lea.smem %s0, 18
  %s37 = sld [smem:[%s36]]
  %s38 = scalar_lea.smem %s0, 19
  %s39 = sld [smem:[%s38]]
  %s40 = scalar_lea.smem %s0, 20
  %s41 = sld [smem:[%s40]]
  %s42 = scalar_lea.smem %s0, 21
  %s43 = sld [smem:[%s42]]
  %s44 = scalar_lea.smem %s0, 22
  %s45 = sld [smem:[%s44]]
  %s46 = scalar_lea.smem %s0, 23
  %s47 = sld [smem:[%s46]]
  %s48 = scalar_lea.smem %s0, 24
  %s49 = sld [smem:[%s48]]
  %s50 = scalar_lea.smem %s0, 25
  %s51 = sld [smem:[%s50]]
  %s52 = scalar_lea.smem %s0, 26
  %s53 = sld [smem:[%s52]]
  %s54 = scalar_lea.smem %s0, 27
  %s55 = sld [smem:[%s54]]
  %s56 = scalar_lea.smem %s0, 28
  %s57 = sld [smem:[%s56]]
  %s58 = scalar_lea.smem %s0, 29
  %s59 = sld [smem:[%s58]]
  %s60 = scalar_lea.smem %s0, 30
  %s61 = sld [smem:[%s60]]
  %s62 = scalar_lea.smem %s0, 31
  %s63 = sld [smem:[%s62]]
  %s64 = scalar_lea.smem %s0, 32
  %s65 = sld [smem:[%s64]]
  %s66 = scalar_lea.smem %s0, 33
  %s67 = sld [smem:[%s66]]
  %s68 = scalar_lea.smem %s0, 34
  %s69 = sld [smem:[%s68]]
  %s70 = scalar_lea.smem %s0, 35
  %s71 = sld [smem:[%s70]]
  %s72 = scalar_lea.smem %s0, 36
  %s73 = sld [smem:[%s72]]
  %s74 = sld [smem:[#allocation0]]
  $region254: #{tpu_custom_call.1} parent=0
    _
  %s76 = ssub.s32 1, %s74
  %s77 = scalar_select 0, %s76, %s74
  $region1: #{tpu_custom_call.1} parent=0
    #allocation2 [shape = 'u8[8192]{0}', space=vmem, size = 0x2000, scoped, tag = 'input window, operand 0, single buffered']
    #allocation3 [shape = 's32[1]{0}', space=sflag, size = 0x4, scoped, tag = 'scoped memory for tpu_custom_call.1']
    #allocation4 [shape = 's32[1]{0}', space=sflag, size = 0x4, scoped, tag = 'scoped memory for tpu_custom_call.1']
    #allocation5 [shape = 'u8[1024]{0}', space=vmem, size = 0x400, scoped, tag = 'input window, operand 2, single buffered']
    #allocation6 [shape = 's32[1]{0}', space=sflag, size = 0x4, scoped, tag = 'scoped memory for tpu_custom_call.1']
    #allocation7 [shape = 'u8[1024]{0}', space=vmem, size = 0x400, scoped, tag = 'input window, operand 3, single buffered']
    #allocation8 [shape = 'u8[4096]{0}', space=vmem, size = 0x1000, scoped, tag = 'input window, operand 4, single buffered']
    #allocation9 [shape = 's32[1]{0}', space=sflag, size = 0x4, scoped, tag = 'scoped memory for tpu_custom_call.1']
    #allocation10 [shape = 'u8[512]{0}', space=vmem, size = 0x400, scoped, tag = 'input window, operand 5, single buffered']
    #allocation11 [shape = 'u8[512]{0}', space=vmem, size = 0x400, scoped, tag = 'input window, operand 6, single buffered']
    #allocation12 [shape = 's32[1]{0}', space=sflag, size = 0x4, scoped, tag = 'scoped memory for tpu_custom_call.1']
    #allocation13 [shape = 'u8[512]{0}', space=vmem, size = 0x400, scoped, tag = 'input window, operand 7, single buffered']
    #allocation14 [shape = 'u8[4096]{0}', space=vmem, size = 0x1000, scoped, tag = 'input window, operand 8, single buffered']
    #allocation15 [shape = 's32[1]{0}', space=sflag, size = 0x4, scoped, tag = 'scoped memory for tpu_custom_call.1']
    #allocation16 [shape = 'u8[512]{0}', space=vmem, size = 0x400, scoped, tag = 'input window, operand 10, single buffered']
    #allocation17 [shape = 'u8[512]{0}', space=vmem, size = 0x400, scoped, tag = 'input window, operand 12, single buffered']
    #allocation18 [shape = 's32[1]{0}', space=sflag, size = 0x4, scoped, tag = 'scoped memory for tpu_custom_call.1']
    #allocation19 [shape = 'u8[512]{0}', space=vmem, size = 0x400, scoped, tag = 'input window, operand 14, single buffered']
    #allocation20 [shape = 'u8[512]{0}', space=vmem, size = 0x400, scoped, tag = 'input window, operand 15, single buffered']
    #allocation21 [shape = 's32[1]{0}', space=sflag, size = 0x4, scoped, tag = 'scoped memory for tpu_custom_call.1']
    #allocation22 [shape = 'u8[512]{0}', space=vmem, size = 0x400, scoped, tag = 'input window, operand 16, single buffered']
    #allocation23 [shape = 'u8[16384]{0}', space=vmem, size = 0x4000, scoped, tag = 'input window, operand 17, single buffered']
    #allocation24 [shape = 's32[1]{0}', space=sflag, size = 0x4, scoped, tag = 'scoped memory for tpu_custom_call.1']
    #allocation25 [shape = 'u8[512]{0}', space=vmem, size = 0x400, scoped, tag = 'input window, operand 18, single buffered']
    #allocation26 [shape = 'u8[512]{0}', space=vmem, size = 0x400, scoped, tag = 'input window, operand 20, single buffered']
    #allocation27 [shape = 's32[1]{0}', space=sflag, size = 0x4, scoped, tag = 'scoped memory for tpu_custom_call.1']
    #allocation28 [shape = 'u8[16384]{0}', space=vmem, size = 0x4000, scoped, tag = 'input window, operand 21, single buffered']
    #allocation29 [shape = 'u8[512]{0}', space=vmem, size = 0x400, scoped, tag = 'input window, operand 22, single buffered']
    #allocation30 [shape = 's32[1]{0}', space=sflag, size = 0x4, scoped, tag = 'scoped memory for tpu_custom_call.1']
    #allocation31 [shape = 'u8[512]{0}', space=vmem, size = 0x400, scoped, tag = 'input window, operand 23, single buffered']
    #allocation32 [shape = 'u8[512]{0}', space=vmem, size = 0x400, scoped, tag = 'input window, operand 24, single buffered']
    #allocation33 [shape = 's32[1]{0}', space=sflag, size = 0x4, scoped, tag = 'scoped memory for tpu_custom_call.1']
    #allocation34 [shape = 'u8[16384]{0}', space=vmem, size = 0x4000, scoped, tag = 'input window, operand 25, single buffered']
    #allocation35 [shape = 'u8[512]{0}', space=vmem, size = 0x400, scoped, tag = 'input window, operand 26, single buffered']
    #allocation36 [shape = 's32[1]{0}', space=sflag, size = 0x4, scoped, tag = 'scoped memory for tpu_custom_call.1']
    #allocation37 [shape = 'u8[16384]{0}', space=vmem, size = 0x4000, scoped, tag = 'input window, operand 29, single buffered']
    #allocation38 [shape = 'u8[16384]{0}', space=vmem, size = 0x4000, scoped, tag = 'input window, operand 30, single buffered']
    #allocation39 [shape = 's32[1]{0}', space=sflag, size = 0x4, scoped, tag = 'scoped memory for tpu_custom_call.1']
    #allocation40 [shape = 'u8[16384]{0}', space=vmem, size = 0x4000, scoped, tag = 'input window, operand 31, single buffered']
    #allocation41 [shape = 'u8[1024]{0}', space=vmem, size = 0x400, scoped, tag = 'output window, operand 0, single buffered']
    %78 = vsyncpa [#allocation3], 0
    %79 = vsyncpa [#allocation6], 0
    %80 = vsyncpa [#allocation9], 0
    %81 = vsyncpa [#allocation12], 0
    %82 = vsyncpa [#allocation15], 0
    %83 = vsyncpa [#allocation18], 0
    %84 = vsyncpa [#allocation21], 0
    %85 = vsyncpa [#allocation24], 0
    %86 = vsyncpa [#allocation27], 0
    %87 = vsyncpa [#allocation30], 0
    %88 = vsyncpa [#allocation33], 0
    %89 = vsyncpa [#allocation36], 0
    %90 = vsyncpa [#allocation39], 0
    %91 = vsyncpa [#allocation4], 0
    // Predicated region
    $region2: #{tpu_custom_call.1} parent=1 // pred_check
      _
    $region3: #{tpu_custom_call.1} parent=1 // pred_check_branch
      %93 = sbr.rel (0) target = $region5
    $region4: #{tpu_custom_call.1} parent=1 // pred_region
      %s95 = ssub.s32 256, 256
      %96 = vsyncadd [#allocation3], %s95
      %s97 = sshll.u32 [#allocation2], 4
      %s98 = int_to_ptr.vmem [resolvable:$true] %s97
      %103 = dma.hbm_to_vmem [thread:$0]  %s1, 256, %s98, [#allocation3], 128, 128, 8
    $region5: #{tpu_custom_call.1} parent=1 // pred_fallthru
      _
    // Predicated region
    $region6: #{tpu_custom_call.1} parent=1 // pred_check
      _
    $region7: #{tpu_custom_call.1} parent=1 // pred_check_branch
      %105 = sbr.rel (0) target = $region9
    $region8: #{tpu_custom_call.1} parent=1 // pred_region
      _
    $region9: #{tpu_custom_call.1} parent=1 // pred_fallthru
      _
    // Predicated region
    $region10: #{tpu_custom_call.1} parent=1 // pred_check
      _
    $region11: #{tpu_custom_call.1} parent=1 // pred_check_branch
      %107 = sbr.rel (0) target = $region13
    $region12: #{tpu_custom_call.1} parent=1 // pred_region
      %s109 = ssub.s32 32, 32
      %110 = vsyncadd [#allocation6], %s109
      %s112 = sshll.u32 [#allocation5], 4
      %s113 = int_to_ptr.vmem [resolvable:$true] %s112
      %115 = dma.hbm_to_vmem [thread:$0]  %s5, 32, %s113, [#allocation6]
    $region13: #{tpu_custom_call.1} parent=1 // pred_fallthru
      _
    // Predicated region
    $region14: #{tpu_custom_call.1} parent=1 // pred_check
      _
    $region15: #{tpu_custom_call.1} parent=1 // pred_check_branch
      %117 = sbr.rel (0) target = $region17
    $region16: #{tpu_custom_call.1} parent=1 // pred_region
      %s119 = ssub.s32 32, 32
      %120 = vsyncadd [#allocation6], %s119
      %s122 = sshll.u32 [#allocation7], 4
      %s123 = int_to_ptr.vmem [resolvable:$true] %s122
      %125 = dma.hbm_to_vmem [thread:$0]  %s7, 32, %s123, [#allocation6]
    $region17: #{tpu_custom_call.1} parent=1 // pred_fallthru
      _
    // Predicated region
    $region18: #{tpu_custom_call.1} parent=1 // pred_check
      _
    $region19: #{tpu_custom_call.1} parent=1 // pred_check_branch
      %127 = sbr.rel (0) target = $region21
    $region20: #{tpu_custom_call.1} parent=1 // pred_region
      %s129 = ssub.s32 128, 128
      %130 = vsyncadd [#allocation9], %s129
      %s132 = sshll.u32 [#allocation8], 4
      %s133 = int_to_ptr.vmem [resolvable:$true] %s132
      %135 = dma.hbm_to_vmem [thread:$0]  %s9, 128, %s133, [#allocation9]
    $region21: #{tpu_custom_call.1} parent=1 // pred_fallthru
      _
    // Predicated region
    $region22: #{tpu_custom_call.1} parent=1 // pred_check
      _
    $region23: #{tpu_custom_call.1} parent=1 // pred_check_branch
      %137 = sbr.rel (0) target = $region25
    $region24: #{tpu_custom_call.1} parent=1 // pred_region
      %s139 = ssub.s32 16, 16
      %140 = vsyncadd [#allocation9], %s139
      %s142 = sshll.u32 [#allocation10], 4
      %s143 = int_to_ptr.vmem [resolvable:$true] %s142
      %145 = dma.hbm_to_vmem [thread:$0]  %s11, 16, %s143, [#allocation9]
    $region25: #{tpu_custom_call.1} parent=1 // pred_fallthru
      _
    // Predicated region
    $region26: #{tpu_custom_call.1} parent=1 // pred_check
      _
    $region27: #{tpu_custom_call.1} parent=1 // pred_check_branch
      %147 = sbr.rel (0) target = $region29
    $region28: #{tpu_custom_call.1} parent=1 // pred_region
      %s149 = ssub.s32 16, 16
      %150 = vsyncadd [#allocation12], %s149
      %s152 = sshll.u32 [#allocation11], 4
      %s153 = int_to_ptr.vmem [resolvable:$true] %s152
      %155 = dma.hbm_to_vmem [thread:$0]  %s13, 16, %s153, [#allocation12]
    $region29: #{tpu_custom_call.1} parent=1 // pred_fallthru
      _
    // Predicated region
    $region30: #{tpu_custom_call.1} parent=1 // pred_check
      _
    $region31: #{tpu_custom_call.1} parent=1 // pred_check_branch
      %157 = sbr.rel (0) target = $region33
    $region32: #{tpu_custom_call.1} parent=1 // pred_region
      %s159 = ssub.s32 16, 16
      %160 = vsyncadd [#allocation12], %s159
      %s162 = sshll.u32 [#allocation13], 4
      %s163 = int_to_ptr.vmem [resolvable:$true] %s162
      %165 = dma.hbm_to_vmem [thread:$0]  %s15, 16, %s163, [#allocation12]
    $region33: #{tpu_custom_call.1} parent=1 // pred_fallthru
      _
    // Predicated region
    $region34: #{tpu_custom_call.1} parent=1 // pred_check
      _
    $region35: #{tpu_custom_call.1} parent=1 // pred_check_branch
      %167 = sbr.rel (0) target = $region37
    $region36: #{tpu_custom_call.1} parent=1 // pred_region
      %s169 = ssub.s32 128, 128
      %170 = vsyncadd [#allocation15], %s169
      %s172 = sshll.u32 [#allocation14], 4
      %s173 = int_to_ptr.vmem [resolvable:$true] %s172
      %175 = dma.hbm_to_vmem [thread:$0]  %s17, 128, %s173, [#allocation15]
    $region37: #{tpu_custom_call.1} parent=1 // pred_fallthru
      _
    // Predicated region
    $region38: #{tpu_custom_call.1} parent=1 // pred_check
      _
    $region39: #{tpu_custom_call.1} parent=1 // pred_check_branch
      %177 = sbr.rel (0) target = $region41
    $region40: #{tpu_custom_call.1} parent=1 // pred_region
      _
    $region41: #{tpu_custom_call.1} parent=1 // pred_fallthru
      _
    // Predicated region
    $region42: #{tpu_custom_call.1} parent=1 // pred_check
      _
    $region43: #{tpu_custom_call.1} parent=1 // pred_check_branch
      %179 = sbr.rel (0) target = $region45
    $region44: #{tpu_custom_call.1} parent=1 // pred_region
      %s181 = ssub.s32 16, 16
      %182 = vsyncadd [#allocation15], %s181
      %s184 = sshll.u32 [#allocation16], 4
      %s185 = int_to_ptr.vmem [resolvable:$true] %s184
      %187 = dma.hbm_to_vmem [thread:$0]  %s21, 16, %s185, [#allocation15]
    $region45: #{tpu_custom_call.1} parent=1 // pred_fallthru
      _
    // Predicated region
    $region46: #{tpu_custom_call.1} parent=1 // pred_check
      _
    $region47: #{tpu_custom_call.1} parent=1 // pred_check_branch
      %189 = sbr.rel (0) target = $region49
    $region48: #{tpu_custom_call.1} parent=1 // pred_region
      _
    $region49: #{tpu_custom_call.1} parent=1 // pred_fallthru
      _
    // Predicated region
    $region50: #{tpu_custom_call.1} parent=1 // pred_check
      _
    $region51: #{tpu_custom_call.1} parent=1 // pred_check_branch
      %191 = sbr.rel (0) target = $region53
    $region52: #{tpu_custom_call.1} parent=1 // pred_region
      %s193 = ssub.s32 16, 16
      %194 = vsyncadd [#allocation18], %s193
      %s196 = sshll.u32 [#allocation17], 4
      %s197 = int_to_ptr.vmem [resolvable:$true] %s196
      %199 = dma.hbm_to_vmem [thread:$0]  %s25, 16, %s197, [#allocation18]
    $region53: #{tpu_custom_call.1} parent=1 // pred_fallthru
      _
    // Predicated region
    $region54: #{tpu_custom_call.1} parent=1 // pred_check
      _
    $region55: #{tpu_custom_call.1} parent=1 // pred_check_branch
      %201 = sbr.rel (0) target = $region57
    $region56: #{tpu_custom_call.1} parent=1 // pred_region
      _
    $region57: #{tpu_custom_call.1} parent=1 // pred_fallthru
      _
    // Predicated region
    $region58: #{tpu_custom_call.1} parent=1 // pred_check
      _
    $region59: #{tpu_custom_call.1} parent=1 // pred_check_branch
      %203 = sbr.rel (0) target = $region61
    $region60: #{tpu_custom_call.1} parent=1 // pred_region
      %s205 = ssub.s32 16, 16
      %206 = vsyncadd [#allocation18], %s205
      %s208 = sshll.u32 [#allocation19], 4
      %s209 = int_to_ptr.vmem [resolvable:$true] %s208
      %211 = dma.hbm_to_vmem [thread:$0]  %s29, 16, %s209, [#allocation18]
    $region61: #{tpu_custom_call.1} parent=1 // pred_fallthru
      _
    // Predicated region
    $region62: #{tpu_custom_call.1} parent=1 // pred_check
      _
    $region63: #{tpu_custom_call.1} parent=1 // pred_check_branch
      %213 = sbr.rel (0) target = $region65
    $region64: #{tpu_custom_call.1} parent=1 // pred_region
      %s215 = ssub.s32 16, 16
      %216 = vsyncadd [#allocation21], %s215
      %s218 = sshll.u32 [#allocation20], 4
      %s219 = int_to_ptr.vmem [resolvable:$true] %s218
      %221 = dma.hbm_to_vmem [thread:$0]  %s31, 16, %s219, [#allocation21]
    $region65: #{tpu_custom_call.1} parent=1 // pred_fallthru
      _
    // Predicated region
    $region66: #{tpu_custom_call.1} parent=1 // pred_check
      _
    $region67: #{tpu_custom_call.1} parent=1 // pred_check_branch
      %223 = sbr.rel (0) target = $region69
    $region68: #{tpu_custom_call.1} parent=1 // pred_region
      %s225 = ssub.s32 16, 16
      %226 = vsyncadd [#allocation21], %s225
      %s228 = sshll.u32 [#allocation22], 4
      %s229 = int_to_ptr.vmem [resolvable:$true] %s228
      %231 = dma.hbm_to_vmem [thread:$0]  %s33, 16, %s229, [#allocation21]
    $region69: #{tpu_custom_call.1} parent=1 // pred_fallthru
      _
    // Predicated region
    $region70: #{tpu_custom_call.1} parent=1 // pred_check
      _
    $region71: #{tpu_custom_call.1} parent=1 // pred_check_branch
      %233 = sbr.rel (0) target = $region73
    $region72: #{tpu_custom_call.1} parent=1 // pred_region
      %s235 = ssub.s32 512, 512
      %236 = vsyncadd [#allocation24], %s235
      %s237 = sshll.u32 [#allocation23], 4
      %s238 = int_to_ptr.vmem [resolvable:$true] %s237
      %243 = dma.hbm_to_vmem [thread:$0]  %s35, 512, %s238, [#allocation24], 128, 128, 8
    $region73: #{tpu_custom_call.1} parent=1 // pred_fallthru
      _
    // Predicated region
    $region74: #{tpu_custom_call.1} parent=1 // pred_check
      _
    $region75: #{tpu_custom_call.1} parent=1 // pred_check_branch
      %245 = sbr.rel (0) target = $region77
    $region76: #{tpu_custom_call.1} parent=1 // pred_region
      %s247 = ssub.s32 16, 16
      %248 = vsyncadd [#allocation24], %s247
      %s250 = sshll.u32 [#allocation25], 4
      %s251 = int_to_ptr.vmem [resolvable:$true] %s250
      %253 = dma.hbm_to_vmem [thread:$0]  %s37, 16, %s251, [#allocation24]
    $region77: #{tpu_custom_call.1} parent=1 // pred_fallthru
      _
    // Predicated region
    $region78: #{tpu_custom_call.1} parent=1 // pred_check
      _
    $region79: #{tpu_custom_call.1} parent=1 // pred_check_branch
      %255 = sbr.rel (0) target = $region81
    $region80: #{tpu_custom_call.1} parent=1 // pred_region
      _
    $region81: #{tpu_custom_call.1} parent=1 // pred_fallthru
      _
    // Predicated region
    $region82: #{tpu_custom_call.1} parent=1 // pred_check
      _
    $region83: #{tpu_custom_call.1} parent=1 // pred_check_branch
      %257 = sbr.rel (0) target = $region85
    $region84: #{tpu_custom_call.1} parent=1 // pred_region
      %s259 = ssub.s32 16, 16
      %260 = vsyncadd [#allocation27], %s259
      %s262 = sshll.u32 [#allocation26], 4
      %s263 = int_to_ptr.vmem [resolvable:$true] %s262
      %265 = dma.hbm_to_vmem [thread:$0]  %s41, 16, %s263, [#allocation27]
    $region85: #{tpu_custom_call.1} parent=1 // pred_fallthru
      _
    // Predicated region
    $region86: #{tpu_custom_call.1} parent=1 // pred_check
      _
    $region87: #{tpu_custom_call.1} parent=1 // pred_check_branch
      %267 = sbr.rel (0) target = $region89
    $region88: #{tpu_custom_call.1} parent=1 // pred_region
      %s269 = ssub.s32 512, 512
      %270 = vsyncadd [#allocation27], %s269
      %s271 = sshll.u32 [#allocation28], 4
      %s272 = int_to_ptr.vmem [resolvable:$true] %s271
      %277 = dma.hbm_to_vmem [thread:$0]  %s43, 512, %s272, [#allocation27], 128, 128, 8
    $region89: #{tpu_custom_call.1} parent=1 // pred_fallthru
      _
    // Predicated region
    $region90: #{tpu_custom_call.1} parent=1 // pred_check
      _
    $region91: #{tpu_custom_call.1} parent=1 // pred_check_branch
      %279 = sbr.rel (0) target = $region93
    $region92: #{tpu_custom_call.1} parent=1 // pred_region
      %s281 = ssub.s32 16, 16
      %282 = vsyncadd [#allocation30], %s281
      %s284 = sshll.u32 [#allocation29], 4
      %s285 = int_to_ptr.vmem [resolvable:$true] %s284
      %287 = dma.hbm_to_vmem [thread:$0]  %s45, 16, %s285, [#allocation30]
    $region93: #{tpu_custom_call.1} parent=1 // pred_fallthru
      _
    // Predicated region
    $region94: #{tpu_custom_call.1} parent=1 // pred_check
      _
    $region95: #{tpu_custom_call.1} parent=1 // pred_check_branch
      %289 = sbr.rel (0) target = $region97
    $region96: #{tpu_custom_call.1} parent=1 // pred_region
      %s291 = ssub.s32 16, 16
      %292 = vsyncadd [#allocation30], %s291
      %s294 = sshll.u32 [#allocation31], 4
      %s295 = int_to_ptr.vmem [resolvable:$true] %s294
      %297 = dma.hbm_to_vmem [thread:$0]  %s47, 16, %s295, [#allocation30]
    $region97: #{tpu_custom_call.1} parent=1 // pred_fallthru
      _
    // Predicated region
    $region98: #{tpu_custom_call.1} parent=1 // pred_check
      _
    $region99: #{tpu_custom_call.1} parent=1 // pred_check_branch
      %299 = sbr.rel (0) target = $region101
    $region100: #{tpu_custom_call.1} parent=1 // pred_region
      %s301 = ssub.s32 16, 16
      %302 = vsyncadd [#allocation33], %s301
      %s304 = sshll.u32 [#allocation32], 4
      %s305 = int_to_ptr.vmem [resolvable:$true] %s304
      %307 = dma.hbm_to_vmem [thread:$0]  %s49, 16, %s305, [#allocation33]
    $region101: #{tpu_custom_call.1} parent=1 // pred_fallthru
      _
    // Predicated region
    $region102: #{tpu_custom_call.1} parent=1 // pred_check
      _
    $region103: #{tpu_custom_call.1} parent=1 // pred_check_branch
      %309 = sbr.rel (0) target = $region105
    $region104: #{tpu_custom_call.1} parent=1 // pred_region
      %s311 = ssub.s32 512, 512
      %312 = vsyncadd [#allocation33], %s311
      %s313 = sshll.u32 [#allocation34], 4
      %s314 = int_to_ptr.vmem [resolvable:$true] %s313
      %319 = dma.hbm_to_vmem [thread:$0]  %s51, 512, %s314, [#allocation33], 128, 128, 8
    $region105: #{tpu_custom_call.1} parent=1 // pred_fallthru
      _
    // Predicated region
    $region106: #{tpu_custom_call.1} parent=1 // pred_check
      _
    $region107: #{tpu_custom_call.1} parent=1 // pred_check_branch
      %321 = sbr.rel (0) target = $region109
    $region108: #{tpu_custom_call.1} parent=1 // pred_region
      %s323 = ssub.s32 16, 16
      %324 = vsyncadd [#allocation36], %s323
      %s326 = sshll.u32 [#allocation35], 4
      %s327 = int_to_ptr.vmem [resolvable:$true] %s326
      %329 = dma.hbm_to_vmem [thread:$0]  %s53, 16, %s327, [#allocation36]
    $region109: #{tpu_custom_call.1} parent=1 // pred_fallthru
      _
    // Predicated region
    $region110: #{tpu_custom_call.1} parent=1 // pred_check
      _
    $region111: #{tpu_custom_call.1} parent=1 // pred_check_branch
      %331 = sbr.rel (0) target = $region113
    $region112: #{tpu_custom_call.1} parent=1 // pred_region
      _
    $region113: #{tpu_custom_call.1} parent=1 // pred_fallthru
      _
    // Predicated region
    $region114: #{tpu_custom_call.1} parent=1 // pred_check
      _
    $region115: #{tpu_custom_call.1} parent=1 // pred_check_branch
      %333 = sbr.rel (0) target = $region117
    $region116: #{tpu_custom_call.1} parent=1 // pred_region
      _
    $region117: #{tpu_custom_call.1} parent=1 // pred_fallthru
      _
    // Predicated region
    $region118: #{tpu_custom_call.1} parent=1 // pred_check
      _
    $region119: #{tpu_custom_call.1} parent=1 // pred_check_branch
      %335 = sbr.rel (0) target = $region121
    $region120: #{tpu_custom_call.1} parent=1 // pred_region
      %s337 = ssub.s32 512, 512
      %338 = vsyncadd [#allocation36], %s337
      %s339 = sshll.u32 [#allocation37], 4
      %s340 = int_to_ptr.vmem [resolvable:$true] %s339
      %345 = dma.hbm_to_vmem [thread:$0]  %s59, 512, %s340, [#allocation36], 128, 128, 8
    $region121: #{tpu_custom_call.1} parent=1 // pred_fallthru
      _
    // Predicated region
    $region122: #{tpu_custom_call.1} parent=1 // pred_check
      _
    $region123: #{tpu_custom_call.1} parent=1 // pred_check_branch
      %347 = sbr.rel (0) target = $region125
    $region124: #{tpu_custom_call.1} parent=1 // pred_region
      %s349 = ssub.s32 512, 512
      %350 = vsyncadd [#allocation39], %s349
      %s351 = sshll.u32 [#allocation38], 4
      %s352 = int_to_ptr.vmem [resolvable:$true] %s351
      %357 = dma.hbm_to_vmem [thread:$0]  %s61, 512, %s352, [#allocation39], 128, 128, 8
    $region125: #{tpu_custom_call.1} parent=1 // pred_fallthru
      _
    // Predicated region
    $region126: #{tpu_custom_call.1} parent=1 // pred_check
      _
    $region127: #{tpu_custom_call.1} parent=1 // pred_check_branch
      %359 = sbr.rel (0) target = $region129
    $region128: #{tpu_custom_call.1} parent=1 // pred_region
      %s361 = ssub.s32 512, 512
      %362 = vsyncadd [#allocation39], %s361
      %s363 = sshll.u32 [#allocation40], 4
      %s364 = int_to_ptr.vmem [resolvable:$true] %s363
      %369 = dma.hbm_to_vmem [thread:$0]  %s63, 512, %s364, [#allocation39], 128, 128, 8
    $region129: #{tpu_custom_call.1} parent=1 // pred_fallthru
      _
    // Predicated region
    $region130: #{tpu_custom_call.1} parent=1 // pred_check
      _
    $region131: #{tpu_custom_call.1} parent=1 // pred_check_branch
      %371 = sbr.rel (0) target = $region133
    $region132: #{tpu_custom_call.1} parent=1 // pred_region
      _
    $region133: #{tpu_custom_call.1} parent=1 // pred_fallthru
      _
    // Predicated region
    $region134: #{tpu_custom_call.1} parent=1 // pred_check
      _
    $region135: #{tpu_custom_call.1} parent=1 // pred_check_branch
      %373 = sbr.rel (0) target = $region137
    $region136: #{tpu_custom_call.1} parent=1 // pred_region
      _
    $region137: #{tpu_custom_call.1} parent=1 // pred_fallthru
      _
    // Predicated region
    $region138: #{tpu_custom_call.1} parent=1 // pred_check
      _
    $region139: #{tpu_custom_call.1} parent=1 // pred_check_branch
      %375 = sbr.rel (0) target = $region141
    $region140: #{tpu_custom_call.1} parent=1 // pred_region
      _
    $region141: #{tpu_custom_call.1} parent=1 // pred_fallthru
      _
    // Predicated region
    $region142: #{tpu_custom_call.1} parent=1 // pred_check
      _
    $region143: #{tpu_custom_call.1} parent=1 // pred_check_branch
      %377 = sbr.rel (0) target = $region145
    $region144: #{tpu_custom_call.1} parent=1 // pred_region
      _
    $region145: #{tpu_custom_call.1} parent=1 // pred_fallthru
      _
    // Predicated region
    $region146: #{tpu_custom_call.1} parent=1 // pred_check
      _
    $region147: #{tpu_custom_call.1} parent=1 // pred_check_branch
      %379 = sbr.rel (0) target = $region149
    $region148: #{tpu_custom_call.1} parent=1 // pred_region
      %380 = dma.done [#allocation3], 256
    $region149: #{tpu_custom_call.1} parent=1 // pred_fallthru
      _
    // Predicated region
    $region150: #{tpu_custom_call.1} parent=1 // pred_check
      _
    $region151: #{tpu_custom_call.1} parent=1 // pred_check_branch
      %382 = sbr.rel (0) target = $region153
    $region152: #{tpu_custom_call.1} parent=1 // pred_region
      %383 = dma.done [#allocation6], 32
    $region153: #{tpu_custom_call.1} parent=1 // pred_fallthru
      _
    // Predicated region
    $region154: #{tpu_custom_call.1} parent=1 // pred_check
      _
    $region155: #{tpu_custom_call.1} parent=1 // pred_check_branch
      %385 = sbr.rel (0) target = $region157
    $region156: #{tpu_custom_call.1} parent=1 // pred_region
      %386 = dma.done [#allocation6], 32
    $region157: #{tpu_custom_call.1} parent=1 // pred_fallthru
      _
    // Predicated region
    $region158: #{tpu_custom_call.1} parent=1 // pred_check
      _
    $region159: #{tpu_custom_call.1} parent=1 // pred_check_branch
      %388 = sbr.rel (0) target = $region161
    $region160: #{tpu_custom_call.1} parent=1 // pred_region
      %389 = dma.done [#allocation9], 128
    $region161: #{tpu_custom_call.1} parent=1 // pred_fallthru
      _
    // Predicated region
    $region162: #{tpu_custom_call.1} parent=1 // pred_check
      _
    $region163: #{tpu_custom_call.1} parent=1 // pred_check_branch
      %391 = sbr.rel (0) target = $region165
    $region164: #{tpu_custom_call.1} parent=1 // pred_region
      %392 = dma.done [#allocation9], 16
    $region165: #{tpu_custom_call.1} parent=1 // pred_fallthru
      _
    // Predicated region
    $region166: #{tpu_custom_call.1} parent=1 // pred_check
      _
    $region167: #{tpu_custom_call.1} parent=1 // pred_check_branch
      %394 = sbr.rel (0) target = $region169
    $region168: #{tpu_custom_call.1} parent=1 // pred_region
      %395 = dma.done [#allocation12], 16
    $region169: #{tpu_custom_call.1} parent=1 // pred_fallthru
      _
    // Predicated region
    $region170: #{tpu_custom_call.1} parent=1 // pred_check
      _
    $region171: #{tpu_custom_call.1} parent=1 // pred_check_branch
      %397 = sbr.rel (0) target = $region173
    $region172: #{tpu_custom_call.1} parent=1 // pred_region
      %398 = dma.done [#allocation12], 16
    $region173: #{tpu_custom_call.1} parent=1 // pred_fallthru
      _
    // Predicated region
    $region174: #{tpu_custom_call.1} parent=1 // pred_check
      _
    $region175: #{tpu_custom_call.1} parent=1 // pred_check_branch
      %400 = sbr.rel (0) target = $region177
    $region176: #{tpu_custom_call.1} parent=1 // pred_region
      %401 = dma.done [#allocation15], 128
    $region177: #{tpu_custom_call.1} parent=1 // pred_fallthru
      _
    // Predicated region
    $region178: #{tpu_custom_call.1} parent=1 // pred_check
      _
    $region179: #{tpu_custom_call.1} parent=1 // pred_check_branch
      %403 = sbr.rel (0) target = $region181
    $region180: #{tpu_custom_call.1} parent=1 // pred_region
      %404 = dma.done [#allocation15], 16
    $region181: #{tpu_custom_call.1} parent=1 // pred_fallthru
      _
    // Predicated region
    $region182: #{tpu_custom_call.1} parent=1 // pred_check
      _
    $region183: #{tpu_custom_call.1} parent=1 // pred_check_branch
      %406 = sbr.rel (0) target = $region185
    $region184: #{tpu_custom_call.1} parent=1 // pred_region
      %407 = dma.done [#allocation18], 16
    $region185: #{tpu_custom_call.1} parent=1 // pred_fallthru
      _
    // Predicated region
    $region186: #{tpu_custom_call.1} parent=1 // pred_check
      _
    $region187: #{tpu_custom_call.1} parent=1 // pred_check_branch
      %409 = sbr.rel (0) target = $region189
    $region188: #{tpu_custom_call.1} parent=1 // pred_region
      %410 = dma.done [#allocation18], 16
    $region189: #{tpu_custom_call.1} parent=1 // pred_fallthru
      _
    // Predicated region
    $region190: #{tpu_custom_call.1} parent=1 // pred_check
      _
    $region191: #{tpu_custom_call.1} parent=1 // pred_check_branch
      %412 = sbr.rel (0) target = $region193
    $region192: #{tpu_custom_call.1} parent=1 // pred_region
      %413 = dma.done [#allocation21], 16
    $region193: #{tpu_custom_call.1} parent=1 // pred_fallthru
      _
    // Predicated region
    $region194: #{tpu_custom_call.1} parent=1 // pred_check
      _
    $region195: #{tpu_custom_call.1} parent=1 // pred_check_branch
      %415 = sbr.rel (0) target = $region197
    $region196: #{tpu_custom_call.1} parent=1 // pred_region
      %416 = dma.done [#allocation21], 16
    $region197: #{tpu_custom_call.1} parent=1 // pred_fallthru
      _
    // Predicated region
    $region198: #{tpu_custom_call.1} parent=1 // pred_check
      _
    $region199: #{tpu_custom_call.1} parent=1 // pred_check_branch
      %418 = sbr.rel (0) target = $region201
    $region200: #{tpu_custom_call.1} parent=1 // pred_region
      %419 = dma.done [#allocation24], 512
    $region201: #{tpu_custom_call.1} parent=1 // pred_fallthru
      _
    // Predicated region
    $region202: #{tpu_custom_call.1} parent=1 // pred_check
      _
    $region203: #{tpu_custom_call.1} parent=1 // pred_check_branch
      %421 = sbr.rel (0) target = $region205
    $region204: #{tpu_custom_call.1} parent=1 // pred_region
      %422 = dma.done [#allocation24], 16
    $region205: #{tpu_custom_call.1} parent=1 // pred_fallthru
      _
    // Predicated region
    $region206: #{tpu_custom_call.1} parent=1 // pred_check
      _
    $region207: #{tpu_custom_call.1} parent=1 // pred_check_branch
      %424 = sbr.rel (0) target = $region209
    $region208: #{tpu_custom_call.1} parent=1 // pred_region
      %425 = dma.done [#allocation27], 16
    $region209: #{tpu_custom_call.1} parent=1 // pred_fallthru
      _
    // Predicated region
    $region210: #{tpu_custom_call.1} parent=1 // pred_check
      _
    $region211: #{tpu_custom_call.1} parent=1 // pred_check_branch
      %427 = sbr.rel (0) target = $region213
    $region212: #{tpu_custom_call.1} parent=1 // pred_region
      %428 = dma.done [#allocation27], 512
    $region213: #{tpu_custom_call.1} parent=1 // pred_fallthru
      _
    // Predicated region
    $region214: #{tpu_custom_call.1} parent=1 // pred_check
      _
    $region215: #{tpu_custom_call.1} parent=1 // pred_check_branch
      %430 = sbr.rel (0) target = $region217
    $region216: #{tpu_custom_call.1} parent=1 // pred_region
      %431 = dma.done [#allocation30], 16
    $region217: #{tpu_custom_call.1} parent=1 // pred_fallthru
      _
    // Predicated region
    $region218: #{tpu_custom_call.1} parent=1 // pred_check
      _
    $region219: #{tpu_custom_call.1} parent=1 // pred_check_branch
      %433 = sbr.rel (0) target = $region221
    $region220: #{tpu_custom_call.1} parent=1 // pred_region
      %434 = dma.done [#allocation30], 16
    $region221: #{tpu_custom_call.1} parent=1 // pred_fallthru
      _
    // Predicated region
    $region222: #{tpu_custom_call.1} parent=1 // pred_check
      _
    $region223: #{tpu_custom_call.1} parent=1 // pred_check_branch
      %436 = sbr.rel (0) target = $region225
    $region224: #{tpu_custom_call.1} parent=1 // pred_region
      %437 = dma.done [#allocation33], 16
    $region225: #{tpu_custom_call.1} parent=1 // pred_fallthru
      _
    // Predicated region
    $region226: #{tpu_custom_call.1} parent=1 // pred_check
      _
    $region227: #{tpu_custom_call.1} parent=1 // pred_check_branch
      %439 = sbr.rel (0) target = $region229
    $region228: #{tpu_custom_call.1} parent=1 // pred_region
      %440 = dma.done [#allocation33], 512
    $region229: #{tpu_custom_call.1} parent=1 // pred_fallthru
      _
    // Predicated region
    $region230: #{tpu_custom_call.1} parent=1 // pred_check
      _
    $region231: #{tpu_custom_call.1} parent=1 // pred_check_branch
      %442 = sbr.rel (0) target = $region233
    $region232: #{tpu_custom_call.1} parent=1 // pred_region
      %443 = dma.done [#allocation36], 16
    $region233: #{tpu_custom_call.1} parent=1 // pred_fallthru
      _
    // Predicated region
    $region234: #{tpu_custom_call.1} parent=1 // pred_check
      _
    $region235: #{tpu_custom_call.1} parent=1 // pred_check_branch
      %445 = sbr.rel (0) target = $region237
    $region236: #{tpu_custom_call.1} parent=1 // pred_region
      %446 = dma.done [#allocation36], 512
    $region237: #{tpu_custom_call.1} parent=1 // pred_fallthru
      _
    // Predicated region
    $region238: #{tpu_custom_call.1} parent=1 // pred_check
      _
    $region239: #{tpu_custom_call.1} parent=1 // pred_check_branch
      %448 = sbr.rel (0) target = $region241
    $region240: #{tpu_custom_call.1} parent=1 // pred_region
      %449 = dma.done [#allocation39], 512
    $region241: #{tpu_custom_call.1} parent=1 // pred_fallthru
      _
    // Predicated region
    $region242: #{tpu_custom_call.1} parent=1 // pred_check
      _
    $region243: #{tpu_custom_call.1} parent=1 // pred_check_branch
      %451 = sbr.rel (0) target = $region245
    $region244: #{tpu_custom_call.1} parent=1 // pred_region
      %452 = dma.done [#allocation39], 512
    $region245: #{tpu_custom_call.1} parent=1 // pred_fallthru
      _
    %v453 = vld [vmem:[#allocation2] sm:$0xff]
    %v454 = vld [vmem:[#allocation2 + $0x8] sm:$0xff]
    %v455 = vld [vmem:[#allocation5] sm:$0x3]
    %v456 = vld [vmem:[%s3] sm:$0xff]
    %v457 = vld [vmem:[%s3 + $0x8] sm:$0xff]
    %v458 = vld [vmem:[#allocation14] sm:$0xff]
    %vm459 = vcmask 64512
    %v461 = vsel %vm459, %v456, 0
    %v464 = vsel %vm459, %v457, 0
    %466 = vmatprep.subr.mxu0 0.0
    %467 = vmatpush1.msra.mxu0 %v458
    %468 = vmatprep.subr.mxu0 0.0
    %469 = vmatpush1.msra.mxu0 0.0
    %470 = vmatprep.subr.mxu0 0.0
    %471 = vmatpush1.msra.mxu0 0.0
    %472 = vmatprep.subr.mxu0 0.0
    %473 = vmatpush1.msra.mxu0 0.0
    %474 = vmatprep.subr.mxu0 0.0
    %475 = vmatpush1.msra.mxu0 0.0
    %476 = vmatprep.subr.mxu0 0.0
    %477 = vmatpush1.msra.mxu0 0.0
    %478 = vmatprep.subr.mxu0 0.0
    %479 = vmatpush1.msra.mxu0 0.0
    %480 = vmatprep.subr.mxu0 0.0
    %481 = vmatpush1.msra.mxu0 0.0
    %482 = vmatprep.subr.mxu0 0.0
    %483 = vmatpush1.msra.mxu0 0.0
    %484 = vmatprep.subr.mxu0 0.0
    %485 = vmatpush1.msra.mxu0 0.0
    %486 = vmatprep.subr.mxu0 0.0
    %487 = vmatpush1.msra.mxu0 0.0
    %488 = vmatprep.subr.mxu0 0.0
    %489 = vmatpush1.msra.mxu0 0.0
    %490 = vmatprep.subr.mxu0 0.0
    %491 = vmatpush1.msra.mxu0 0.0
    %492 = vmatprep.subr.mxu0 0.0
    %493 = vmatpush1.msra.mxu0 0.0
    %494 = vmatprep.subr.mxu0 0.0
    %495 = vmatpush1.msra.mxu0 0.0
    %496 = vmatprep.subr.mxu0 0.0
    %497 = vmatpush1.msra.mxu0 0.0
    %498 = vmatprep.subr.mxu0 0.0
    %499 = vmatpush1.msra.mxu0 0.0
    %500 = vmatprep.subr.mxu0 0.0
    %501 = vmatpush1.msra.mxu0 0.0
    %502 = vmatprep.subr.mxu0 0.0
    %503 = vmatpush1.msra.mxu0 0.0
    %504 = vmatprep.subr.mxu0 0.0
    %505 = vmatpush1.msra.mxu0 0.0
    %506 = vmatprep.subr.mxu0 0.0
    %507 = vmatpush1.msra.mxu0 0.0
    %508 = vmatprep.subr.mxu0 0.0
    %509 = vmatpush1.msra.mxu0 0.0
    %510 = vmatprep.subr.mxu0 0.0
    %511 = vmatpush1.msra.mxu0 0.0
    %512 = vmatprep.subr.mxu0 0.0
    %513 = vmatpush1.msra.mxu0 0.0
    %514 = vmatprep.subr.mxu0 0.0
    %515 = vmatpush1.msra.mxu0 0.0
    %516 = vmatprep.subr.mxu0 0.0
    %517 = vmatpush1.msra.mxu0 0.0
    %518 = vmatprep.subr.mxu0 0.0
    %519 = vmatpush1.msra.mxu0 0.0
    %520 = vmatprep.subr.mxu0 0.0
    %521 = vmatpush1.msra.mxu0 0.0
    %522 = vmatprep.subr.mxu0 0.0
    %523 = vmatpush1.msra.mxu0 0.0
    %524 = vmatprep.subr.mxu0 0.0
    %525 = vmatpush1.msra.mxu0 0.0
    %526 = vmatprep.subr.mxu0 0.0
    %527 = vmatpush1.msra.mxu0 0.0
    %528 = vmatprep.subr.mxu0 0.0
    %529 = vmatpush1.msra.mxu0 0.0
    %530 = vmatprep.mubr.f32.mxu0 0.0
    %531 = vmatmul.mubr.f32.gmra.mrb[0].mxu0 %v461
    %v532 = vpop.f32.mrb[0].mxu0
    %v533 = vadd.f32 0.0, %v532
    %v534 = vpop.f32.mrb[0].mxu0
    %535 = vmatprep.mubr.f32.mxu0 0.0
    %536 = vmatmul.mubr.f32.gmra.mrb[0].mxu0 %v464
    %v537 = vpop.f32.mrb[0].mxu0
    %v538 = vadd.f32 0.0, %v537
    %v539 = vpop.f32.mrb[0].mxu0
    %540 = vdwg.mxu0
    %v541 = vld [vmem:[#allocation8] sm:$0xff]
    %v542 = vld [vmem:[#allocation10] sm:$0x1]
    %v543 = vld [vmem:[#allocation11] sm:$0x1]
    %v544 = vld [vmem:[#allocation13] sm:$0x1]
    %v545 = vld [vmem:[%s19] sm:$0xff]
    %v546 = vld [vmem:[%s19 + $0x8] sm:$0xff]
    %v547 = vld [vmem:[%s19 + $0x10] sm:$0xff]
    %v548 = vld [vmem:[%s19 + $0x18] sm:$0xff]
    %v549 = vld [vmem:[#allocation16] sm:$0x1]
    %v550 = vld [vmem:[%s23] sm:$0xff]
    %v551 = vld [vmem:[%s23 + $0x8] sm:$0xff]
    %v552 = vld [vmem:[%s23 + $0x10] sm:$0xff]
    %v553 = vld [vmem:[%s23 + $0x18] sm:$0xff]
    %v554 = vld [vmem:[#allocation17] sm:$0x1]
    %vm555 = vcmask 130048
    %v557 = vsel %vm555, %v453, 0
    %v560 = vsel %vm555, %v454, 0
    %562 = vmatprep.subr.mxu0 0.0
    %563 = vmatpush1.msra.mxu0 %v456
    %564 = vmatprep.subr.mxu0 0.0
    %565 = vmatpush1.msra.mxu0 %v457
    %566 = vmatprep.subr.mxu0 0.0
    %567 = vmatpush1.msra.mxu0 0.0
    %568 = vmatprep.subr.mxu0 0.0
    %569 = vmatpush1.msra.mxu0 0.0
    %570 = vmatprep.subr.mxu0 0.0
    %571 = vmatpush1.msra.mxu0 0.0
    %572 = vmatprep.subr.mxu0 0.0
    %573 = vmatpush1.msra.mxu0 0.0
    %574 = vmatprep.subr.mxu0 0.0
    %575 = vmatpush1.msra.mxu0 0.0
    %576 = vmatprep.subr.mxu0 0.0
    %577 = vmatpush1.msra.mxu0 0.0
    %578 = vmatprep.subr.mxu0 0.0
    %579 = vmatpush1.msra.mxu0 0.0
    %580 = vmatprep.subr.mxu0 0.0
    %581 = vmatpush1.msra.mxu0 0.0
    %582 = vmatprep.subr.mxu0 0.0
    %583 = vmatpush1.msra.mxu0 0.0
    %584 = vmatprep.subr.mxu0 0.0
    %585 = vmatpush1.msra.mxu0 0.0
    %586 = vmatprep.subr.mxu0 0.0
    %587 = vmatpush1.msra.mxu0 0.0
    %588 = vmatprep.subr.mxu0 0.0
    %589 = vmatpush1.msra.mxu0 0.0
    %590 = vmatprep.subr.mxu0 0.0
    %591 = vmatpush1.msra.mxu0 0.0
    %592 = vmatprep.subr.mxu0 0.0
    %593 = vmatpush1.msra.mxu0 0.0
    %594 = vmatprep.subr.mxu0 0.0
    %595 = vmatpush1.msra.mxu0 0.0
    %596 = vmatprep.subr.mxu0 0.0
    %597 = vmatpush1.msra.mxu0 0.0
    %598 = vmatprep.subr.mxu0 0.0
    %599 = vmatpush1.msra.mxu0 0.0
    %600 = vmatprep.subr.mxu0 0.0
    %601 = vmatpush1.msra.mxu0 0.0
    %602 = vmatprep.subr.mxu0 0.0
    %603 = vmatpush1.msra.mxu0 0.0
    %604 = vmatprep.subr.mxu0 0.0
    %605 = vmatpush1.msra.mxu0 0.0
    %606 = vmatprep.subr.mxu0 0.0
    %607 = vmatpush1.msra.mxu0 0.0
    %608 = vmatprep.subr.mxu0 0.0
    %609 = vmatpush1.msra.mxu0 0.0
    %610 = vmatprep.subr.mxu0 0.0
    %611 = vmatpush1.msra.mxu0 0.0
    %612 = vmatprep.subr.mxu0 0.0
    %613 = vmatpush1.msra.mxu0 0.0
    %614 = vmatprep.subr.mxu0 0.0
    %615 = vmatpush1.msra.mxu0 0.0
    %616 = vmatprep.subr.mxu0 0.0
    %617 = vmatpush1.msra.mxu0 0.0
    %618 = vmatprep.subr.mxu0 0.0
    %619 = vmatpush1.msra.mxu0 0.0
    %620 = vmatprep.subr.mxu0 0.0
    %621 = vmatpush1.msra.mxu0 0.0
    %622 = vmatprep.subr.mxu0 0.0
    %623 = vmatpush1.msra.mxu0 0.0
    %624 = vmatprep.subr.mxu0 0.0
    %625 = vmatpush1.msra.mxu0 0.0
    %626 = vmatprep.mubr.f32.mxu0 0.0
    %627 = vmatmul.mubr.f32.gmra.mrb[0].mxu0 %v557
    %v628 = vpop.f32.mrb[0].mxu0
    %v629 = vadd.f32 0.0, %v628
    %v630 = vpop.f32.mrb[0].mxu0
    %631 = vmatprep.mubr.f32.mxu0 0.0
    %632 = vmatmul.mubr.f32.gmra.mrb[0].mxu0 %v560
    %v633 = vpop.f32.mrb[0].mxu0
    %v634 = vadd.f32 0.0, %v633
    %v635 = vpop.f32.mrb[0].mxu0
    %636 = vdwg.mxu0
    %v638 = vlaneseq
    %v639 = vshrl.u32 %v638, 7
    %v640 = vsub.s32 0, %v639
    %v641 = vrot.slane %v542, %v640
    %v644 = vsel %vm459, %v629, 0
    %v647 = vsel %vm459, %v634, 0
    %649 = vmatprep.subr.mxu0 0.0
    %650 = vmatpush1.msra.mxu0 %v541
    %651 = vmatprep.subr.mxu0 0.0
    %652 = vmatpush1.msra.mxu0 0.0
    %653 = vmatprep.subr.mxu0 0.0
    %654 = vmatpush1.msra.mxu0 0.0
    %655 = vmatprep.subr.mxu0 0.0
    %656 = vmatpush1.msra.mxu0 0.0
    %657 = vmatprep.subr.mxu0 0.0
    %658 = vmatpush1.msra.mxu0 0.0
    %659 = vmatprep.subr.mxu0 0.0
    %660 = vmatpush1.msra.mxu0 0.0
    %661 = vmatprep.subr.mxu0 0.0
    %662 = vmatpush1.msra.mxu0 0.0
    %663 = vmatprep.subr.mxu0 0.0
    %664 = vmatpush1.msra.mxu0 0.0
    %665 = vmatprep.subr.mxu0 0.0
    %666 = vmatpush1.msra.mxu0 0.0
    %667 = vmatprep.subr.mxu0 0.0
    %668 = vmatpush1.msra.mxu0 0.0
    %669 = vmatprep.subr.mxu0 0.0
    %670 = vmatpush1.msra.mxu0 0.0
    %671 = vmatprep.subr.mxu0 0.0
    %672 = vmatpush1.msra.mxu0 0.0
    %673 = vmatprep.subr.mxu0 0.0
    %674 = vmatpush1.msra.mxu0 0.0
    %675 = vmatprep.subr.mxu0 0.0
    %676 = vmatpush1.msra.mxu0 0.0
    %677 = vmatprep.subr.mxu0 0.0
    %678 = vmatpush1.msra.mxu0 0.0
    %679 = vmatprep.subr.mxu0 0.0
    %680 = vmatpush1.msra.mxu0 0.0
    %681 = vmatprep.subr.mxu0 0.0
    %682 = vmatpush1.msra.mxu0 0.0
    %683 = vmatprep.subr.mxu0 0.0
    %684 = vmatpush1.msra.mxu0 0.0
    %685 = vmatprep.subr.mxu0 0.0
    %686 = vmatpush1.msra.mxu0 0.0
    %687 = vmatprep.subr.mxu0 0.0
    %688 = vmatpush1.msra.mxu0 0.0
    %689 = vmatprep.subr.mxu0 0.0
    %690 = vmatpush1.msra.mxu0 0.0
    %691 = vmatprep.subr.mxu0 0.0
    %692 = vmatpush1.msra.mxu0 0.0
    %693 = vmatprep.subr.mxu0 0.0
    %694 = vmatpush1.msra.mxu0 0.0
    %695 = vmatprep.subr.mxu0 0.0
    %696 = vmatpush1.msra.mxu0 0.0
    %697 = vmatprep.subr.mxu0 0.0
    %698 = vmatpush1.msra.mxu0 0.0
    %699 = vmatprep.subr.mxu0 0.0
    %700 = vmatpush1.msra.mxu0 0.0
    %701 = vmatprep.subr.mxu0 0.0
    %702 = vmatpush1.msra.mxu0 0.0
    %703 = vmatprep.subr.mxu0 0.0
    %704 = vmatpush1.msra.mxu0 0.0
    %705 = vmatprep.subr.mxu0 0.0
    %706 = vmatpush1.msra.mxu0 0.0
    %707 = vmatprep.subr.mxu0 0.0
    %708 = vmatpush1.msra.mxu0 0.0
    %709 = vmatprep.subr.mxu0 0.0
    %710 = vmatpush1.msra.mxu0 0.0
    %711 = vmatprep.subr.mxu0 0.0
    %712 = vmatpush1.msra.mxu0 0.0
    %713 = vmatprep.mubr.f32.mxu0 0.0
    %714 = vmatmul.mubr.f32.gmra.mrb[0].mxu0 %v644
    %v715 = vpop.f32.mrb[0].mxu0
    %v716 = vadd.f32 %v641, %v715
    %v717 = vpop.f32.mrb[0].mxu0
    %718 = vmatprep.mubr.f32.mxu0 0.0
    %719 = vmatmul.mubr.f32.gmra.mrb[0].mxu0 %v647
    %v720 = vpop.f32.mrb[0].mxu0
    %v721 = vadd.f32 %v641, %v720
    %v722 = vpop.f32.mrb[0].mxu0
    %723 = vdwg.mxu0
    %vm724 = vcmask 261120
    %v725 = vsel %vm724, %v716, 0.0
    %v726 = vsel %vm724, %v721, 0.0
    %v727 = vadd.f32 %v725, %v726
    %v728 = vrot.slane %v727, 4
    %v729 = vadd.f32 %v727, %v728
    %v730 = vrot.slane %v729, 2
    %v731 = vadd.f32 %v729, %v730
    %v732 = vrot.slane %v731, 1
    %v733 = vadd.f32 %v731, %v732
    %v734 = vrcp.pop 16.0
    %v735 = vmul.f32 %v733, %v734
    %v736 = vsub.f32 %v716, %v735
    %v737 = vsub.f32 %v721, %v735
    %v738 = vmul.f32 %v736, %v736
    %v739 = vmul.f32 %v737, %v737
    %v740 = vsel %vm724, %v738, 0.0
    %v741 = vsel %vm724, %v739, 0.0
    %v742 = vadd.f32 %v740, %v741
    %v743 = vrot.slane %v742, 4
    %v744 = vadd.f32 %v742, %v743
    %v745 = vrot.slane %v744, 2
    %v746 = vadd.f32 %v744, %v745
    %v747 = vrot.slane %v746, 1
    %v748 = vadd.f32 %v746, %v747
    %v749 = vmul.f32 %v748, %v734
    %v750 = vadd.f32 %v749, 32.0
    %v751 = vrsqrt.pop %v750
    %v752 = vmul.f32 %v736, %v751
    %v753 = vmul.f32 %v737, %v751
    %v755 = vlaneseq
    %v756 = vshrl.u32 %v755, 7
    %v757 = vsub.s32 0, %v756
    %v758 = vrot.slane %v543, %v757
    %v760 = vmul.f32 %v752, %v758
    %v761 = vmul.f32 %v753, %v758
    %v763 = vlaneseq
    %v764 = vshrl.u32 %v763, 7
    %v765 = vsub.s32 0, %v764
    %v766 = vrot.slane %v544, %v765
    %v768 = vadd.f32 %v760, %v766
    %v769 = vadd.f32 %v761, %v766
    %v770 = vmax.f32 %v768, 0.0
    %v771 = vmax.f32 %v769, 0.0
    %v773 = vlaneseq
    %v774 = vshrl.u32 %v773, 7
    %v775 = vsub.s32 0, %v774
    %v776 = vrot.slane %v549, %v775
    %v779 = vsel %vm724, %v533, 0
    %v782 = vsel %vm724, %v538, 0
    %784 = vmatprep.subr.mxu0 0.0
    %785 = vmatpush1.msra.mxu0 %v545
    %786 = vmatprep.subr.mxu0 0.0
    %787 = vmatpush1.msra.mxu0 %v546
    %788 = vmatprep.subr.mxu0 0.0
    %789 = vmatpush1.msra.mxu0 %v547
    %790 = vmatprep.subr.mxu0 0.0
    %791 = vmatpush1.msra.mxu0 %v548
    %792 = vmatprep.subr.mxu0 0.0
    %793 = vmatpush1.msra.mxu0 0.0
    %794 = vmatprep.subr.mxu0 0.0
    %795 = vmatpush1.msra.mxu0 0.0
    %796 = vmatprep.subr.mxu0 0.0
    %797 = vmatpush1.msra.mxu0 0.0
    %798 = vmatprep.subr.mxu0 0.0
    %799 = vmatpush1.msra.mxu0 0.0
    %800 = vmatprep.subr.mxu0 0.0
    %801 = vmatpush1.msra.mxu0 0.0
    %802 = vmatprep.subr.mxu0 0.0
    %803 = vmatpush1.msra.mxu0 0.0
    %804 = vmatprep.subr.mxu0 0.0
    %805 = vmatpush1.msra.mxu0 0.0
    %806 = vmatprep.subr.mxu0 0.0
    %807 = vmatpush1.msra.mxu0 0.0
    %808 = vmatprep.subr.mxu0 0.0
    %809 = vmatpush1.msra.mxu0 0.0
    %810 = vmatprep.subr.mxu0 0.0
    %811 = vmatpush1.msra.mxu0 0.0
    %812 = vmatprep.subr.mxu0 0.0
    %813 = vmatpush1.msra.mxu0 0.0
    %814 = vmatprep.subr.mxu0 0.0
    %815 = vmatpush1.msra.mxu0 0.0
    %816 = vmatprep.subr.mxu0 0.0
    %817 = vmatpush1.msra.mxu0 0.0
    %818 = vmatprep.subr.mxu0 0.0
    %819 = vmatpush1.msra.mxu0 0.0
    %820 = vmatprep.subr.mxu0 0.0
    %821 = vmatpush1.msra.mxu0 0.0
    %822 = vmatprep.subr.mxu0 0.0
    %823 = vmatpush1.msra.mxu0 0.0
    %824 = vmatprep.subr.mxu0 0.0
    %825 = vmatpush1.msra.mxu0 0.0
    %826 = vmatprep.subr.mxu0 0.0
    %827 = vmatpush1.msra.mxu0 0.0
    %828 = vmatprep.subr.mxu0 0.0
    %829 = vmatpush1.msra.mxu0 0.0
    %830 = vmatprep.subr.mxu0 0.0
    %831 = vmatpush1.msra.mxu0 0.0
    %832 = vmatprep.subr.mxu0 0.0
    %833 = vmatpush1.msra.mxu0 0.0
    %834 = vmatprep.subr.mxu0 0.0
    %835 = vmatpush1.msra.mxu0 0.0
    %836 = vmatprep.subr.mxu0 0.0
    %837 = vmatpush1.msra.mxu0 0.0
    %838 = vmatprep.subr.mxu0 0.0
    %839 = vmatpush1.msra.mxu0 0.0
    %840 = vmatprep.subr.mxu0 0.0
    %841 = vmatpush1.msra.mxu0 0.0
    %842 = vmatprep.subr.mxu0 0.0
    %843 = vmatpush1.msra.mxu0 0.0
    %844 = vmatprep.subr.mxu0 0.0
    %845 = vmatpush1.msra.mxu0 0.0
    %846 = vmatprep.subr.mxu0 0.0
    %847 = vmatpush1.msra.mxu0 0.0
    %848 = vmatprep.mubr.f32.mxu0 0.0
    %849 = vmatmul.mubr.f32.gmra.mrb[0].mxu0 %v779
    %v850 = vpop.f32.mrb[0].mxu0
    %v851 = vadd.f32 %v776, %v850
    %v852 = vpop.f32.mrb[0].mxu0
    %853 = vmatprep.mubr.f32.mxu0 0.0
    %854 = vmatmul.mubr.f32.gmra.mrb[0].mxu0 %v782
    %v855 = vpop.f32.mrb[0].mxu0
    %v856 = vadd.f32 %v776, %v855
    %v857 = vpop.f32.mrb[0].mxu0
    %858 = vdwg.mxu0
    %v860 = vsel %vm724, %v770, 0
    %v863 = vsel %vm724, %v771, 0
    %865 = vmatprep.subr.mxu0 0.0
    %866 = vmatpush1.msra.mxu0 %v550
    %867 = vmatprep.subr.mxu0 0.0
    %868 = vmatpush1.msra.mxu0 %v551
    %869 = vmatprep.subr.mxu0 0.0
    %870 = vmatpush1.msra.mxu0 %v552
    %871 = vmatprep.subr.mxu0 0.0
    %872 = vmatpush1.msra.mxu0 %v553
    %873 = vmatprep.subr.mxu0 0.0
    %874 = vmatpush1.msra.mxu0 0.0
    %875 = vmatprep.subr.mxu0 0.0
    %876 = vmatpush1.msra.mxu0 0.0
    %877 = vmatprep.subr.mxu0 0.0
    %878 = vmatpush1.msra.mxu0 0.0
    %879 = vmatprep.subr.mxu0 0.0
    %880 = vmatpush1.msra.mxu0 0.0
    %881 = vmatprep.subr.mxu0 0.0
    %882 = vmatpush1.msra.mxu0 0.0
    %883 = vmatprep.subr.mxu0 0.0
    %884 = vmatpush1.msra.mxu0 0.0
    %885 = vmatprep.subr.mxu0 0.0
    %886 = vmatpush1.msra.mxu0 0.0
    %887 = vmatprep.subr.mxu0 0.0
    %888 = vmatpush1.msra.mxu0 0.0
    %889 = vmatprep.subr.mxu0 0.0
    %890 = vmatpush1.msra.mxu0 0.0
    %891 = vmatprep.subr.mxu0 0.0
    %892 = vmatpush1.msra.mxu0 0.0
    %893 = vmatprep.subr.mxu0 0.0
    %894 = vmatpush1.msra.mxu0 0.0
    %895 = vmatprep.subr.mxu0 0.0
    %896 = vmatpush1.msra.mxu0 0.0
    %897 = vmatprep.subr.mxu0 0.0
    %898 = vmatpush1.msra.mxu0 0.0
    %899 = vmatprep.subr.mxu0 0.0
    %900 = vmatpush1.msra.mxu0 0.0
    %901 = vmatprep.subr.mxu0 0.0
    %902 = vmatpush1.msra.mxu0 0.0
    %903 = vmatprep.subr.mxu0 0.0
    %904 = vmatpush1.msra.mxu0 0.0
    %905 = vmatprep.subr.mxu0 0.0
    %906 = vmatpush1.msra.mxu0 0.0
    %907 = vmatprep.subr.mxu0 0.0
    %908 = vmatpush1.msra.mxu0 0.0
    %909 = vmatprep.subr.mxu0 0.0
    %910 = vmatpush1.msra.mxu0 0.0
    %911 = vmatprep.subr.mxu0 0.0
    %912 = vmatpush1.msra.mxu0 0.0
    %913 = vmatprep.subr.mxu0 0.0
    %914 = vmatpush1.msra.mxu0 0.0
    %915 = vmatprep.subr.mxu0 0.0
    %916 = vmatpush1.msra.mxu0 0.0
    %917 = vmatprep.subr.mxu0 0.0
    %918 = vmatpush1.msra.mxu0 0.0
    %919 = vmatprep.subr.mxu0 0.0
    %920 = vmatpush1.msra.mxu0 0.0
    %921 = vmatprep.subr.mxu0 0.0
    %922 = vmatpush1.msra.mxu0 0.0
    %923 = vmatprep.subr.mxu0 0.0
    %924 = vmatpush1.msra.mxu0 0.0
    %925 = vmatprep.subr.mxu0 0.0
    %926 = vmatpush1.msra.mxu0 0.0
    %927 = vmatprep.subr.mxu0 0.0
    %928 = vmatpush1.msra.mxu0 0.0
    %929 = vmatprep.mubr.f32.mxu0 0.0
    %930 = vmatmul.mubr.f32.gmra.mrb[0].mxu0 %v860
    %v931 = vpop.f32.mrb[0].mxu0
    %v932 = vadd.f32 0.0, %v931
    %v933 = vpop.f32.mrb[0].mxu0
    %934 = vmatprep.mubr.f32.mxu0 0.0
    %935 = vmatmul.mubr.f32.gmra.mrb[0].mxu0 %v863
    %v936 = vpop.f32.mrb[0].mxu0
    %v937 = vadd.f32 0.0, %v936
    %v938 = vpop.f32.mrb[0].mxu0
    %939 = vdwg.mxu0
    %v940 = vadd.f32 %v851, %v932
    %v941 = vadd.f32 %v856, %v937
    %v943 = vlaneseq
    %v944 = vshrl.u32 %v943, 7
    %v945 = vsub.s32 0, %v944
    %v946 = vrot.slane %v554, %v945
    %v948 = vadd.f32 %v940, %v946
    %v949 = vadd.f32 %v941, %v946
    %v950 = vxor.u32 %v948, 2147483648
    %v951 = vxor.u32 %v949, 2147483648
    %v952 = vmul.f32 %v950, 1.442695
    %v953 = vpow.pop %v952
    %v954 = vmul.f32 %v951, 1.442695
    %v955 = vpow.pop %v954
    %v956 = vadd.f32 %v953, 1.0
    %v957 = vadd.f32 %v955, 1.0
    %v958 = vrcp.pop %v956
    %v959 = vmul.f32 1.0, %v958
    %v960 = vrcp.pop %v957
    %v961 = vmul.f32 1.0, %v960
    %v962 = vmul.f32 %v959, %v770
    %v963 = vmul.f32 %v961, %v771
    %v964 = vsub.f32 1.0, %v959
    %v965 = vsub.f32 1.0, %v961
    %v966 = vmul.f32 %v964, %v533
    %v967 = vmul.f32 %v965, %v538
    %v968 = vadd.f32 %v962, %v966
    %v969 = vadd.f32 %v963, %v967
    %v971 = vsel %vm555, %v455, 0
    %973 = vmatprep.subr.mxu0 0.0
    %974 = vmatpush1.msra.mxu0 %v968
    %975 = vmatprep.subr.mxu0 0.0
    %976 = vmatpush1.msra.mxu0 %v969
    %977 = vmatprep.subr.mxu0 0.0
    %978 = vmatpush1.msra.mxu0 0.0
    %979 = vmatprep.subr.mxu0 0.0
    %980 = vmatpush1.msra.mxu0 0.0
    %981 = vmatprep.subr.mxu0 0.0
    %982 = vmatpush1.msra.mxu0 0.0
    %983 = vmatprep.subr.mxu0 0.0
    %984 = vmatpush1.msra.mxu0 0.0
    %985 = vmatprep.subr.mxu0 0.0
    %986 = vmatpush1.msra.mxu0 0.0
    %987 = vmatprep.subr.mxu0 0.0
    %988 = vmatpush1.msra.mxu0 0.0
    %989 = vmatprep.subr.mxu0 0.0
    %990 = vmatpush1.msra.mxu0 0.0
    %991 = vmatprep.subr.mxu0 0.0
    %992 = vmatpush1.msra.mxu0 0.0
    %993 = vmatprep.subr.mxu0 0.0
    %994 = vmatpush1.msra.mxu0 0.0
    %995 = vmatprep.subr.mxu0 0.0
    %996 = vmatpush1.msra.mxu0 0.0
    %997 = vmatprep.subr.mxu0 0.0
    %998 = vmatpush1.msra.mxu0 0.0
    %999 = vmatprep.subr.mxu0 0.0
    %1000 = vmatpush1.msra.mxu0 0.0
    %1001 = vmatprep.subr.mxu0 0.0
    %1002 = vmatpush1.msra.mxu0 0.0
    %1003 = vmatprep.subr.mxu0 0.0
    %1004 = vmatpush1.msra.mxu0 0.0
    %1005 = vmatprep.subr.mxu0 0.0
    %1006 = vmatpush1.msra.mxu0 0.0
    %1007 = vmatprep.subr.mxu0 0.0
    %1008 = vmatpush1.msra.mxu0 0.0
    %1009 = vmatprep.subr.mxu0 0.0
    %1010 = vmatpush1.msra.mxu0 0.0
    %1011 = vmatprep.subr.mxu0 0.0
    %1012 = vmatpush1.msra.mxu0 0.0
    %1013 = vmatprep.subr.mxu0 0.0
    %1014 = vmatpush1.msra.mxu0 0.0
    %1015 = vmatprep.subr.mxu0 0.0
    %1016 = vmatpush1.msra.mxu0 0.0
    %1017 = vmatprep.subr.mxu0 0.0
    %1018 = vmatpush1.msra.mxu0 0.0
    %1019 = vmatprep.subr.mxu0 0.0
    %1020 = vmatpush1.msra.mxu0 0.0
    %1021 = vmatprep.subr.mxu0 0.0
    %1022 = vmatpush1.msra.mxu0 0.0
    %1023 = vmatprep.subr.mxu0 0.0
    %1024 = vmatpush1.msra.mxu0 0.0
    %1025 = vmatprep.subr.mxu0 0.0
    %1026 = vmatpush1.msra.mxu0 0.0
    %1027 = vmatprep.subr.mxu0 0.0
    %1028 = vmatpush1.msra.mxu0 0.0
    %1029 = vmatprep.subr.mxu0 0.0
    %1030 = vmatpush1.msra.mxu0 0.0
    %1031 = vmatprep.subr.mxu0 0.0
    %1032 = vmatpush1.msra.mxu0 0.0
    %1033 = vmatprep.subr.mxu0 0.0
    %1034 = vmatpush1.msra.mxu0 0.0
    %1035 = vmatprep.subr.mxu0 0.0
    %1036 = vmatpush1.msra.mxu0 0.0
    %1037 = vmatprep.mubr.f32.mxu0 0.0
    %1038 = vmatmul.mubr.f32.gmra.mrb[0].mxu0 %v971
    %v1039 = vpop.f32.mrb[0].mxu0
    %v1040 = vadd.f32 0.0, %v1039
    %v1041 = vpop.f32.mrb[0].mxu0
    %1042 = vdwg.mxu0
    %v1043 = vld [vmem:[%s27] sm:$0xff]
    %v1044 = vld [vmem:[%s27 + $0x8] sm:$0xff]
    %v1045 = vld [vmem:[%s27 + $0x10] sm:$0xff]
    %v1046 = vld [vmem:[%s27 + $0x18] sm:$0xff]
    %v1047 = vld [vmem:[#allocation19] sm:$0x1]
    %v1048 = vld [vmem:[#allocation20] sm:$0x1]
    %v1049 = vld [vmem:[#allocation22] sm:$0x1]
    %v1050 = vld [vmem:[#allocation23] sm:$0xff]
    %v1051 = vld [vmem:[#allocation23 + $0x8] sm:$0xff]
    %v1052 = vld [vmem:[#allocation23 + $0x10] sm:$0xff]
    %v1053 = vld [vmem:[#allocation23 + $0x18] sm:$0xff]
    %v1054 = vld [vmem:[#allocation25] sm:$0x1]
    %v1055 = vld [vmem:[%s39] sm:$0xff]
    %v1056 = vld [vmem:[%s39 + $0x8] sm:$0xff]
    %v1057 = vld [vmem:[%s39 + $0x10] sm:$0xff]
    %v1058 = vld [vmem:[%s39 + $0x18] sm:$0xff]
    %v1059 = vld [vmem:[#allocation26] sm:$0x1]
    %1060 = vmatprep.subr.mxu0 0.0
    %1061 = vmatpush1.msra.mxu0 %v968
    %1062 = vmatprep.subr.mxu0 0.0
    %1063 = vmatpush1.msra.mxu0 %v969
    %1064 = vmatprep.subr.mxu0 0.0
    %1065 = vmatpush1.msra.mxu0 0.0
    %1066 = vmatprep.subr.mxu0 0.0
    %1067 = vmatpush1.msra.mxu0 0.0
    %1068 = vmatprep.subr.mxu0 0.0
    %1069 = vmatpush1.msra.mxu0 0.0
    %1070 = vmatprep.subr.mxu0 0.0
    %1071 = vmatpush1.msra.mxu0 0.0
    %1072 = vmatprep.subr.mxu0 0.0
    %1073 = vmatpush1.msra.mxu0 0.0
    %1074 = vmatprep.subr.mxu0 0.0
    %1075 = vmatpush1.msra.mxu0 0.0
    %1076 = vmatprep.subr.mxu0 0.0
    %1077 = vmatpush1.msra.mxu0 0.0
    %1078 = vmatprep.subr.mxu0 0.0
    %1079 = vmatpush1.msra.mxu0 0.0
    %1080 = vmatprep.subr.mxu0 0.0
    %1081 = vmatpush1.msra.mxu0 0.0
    %1082 = vmatprep.subr.mxu0 0.0
    %1083 = vmatpush1.msra.mxu0 0.0
    %1084 = vmatprep.subr.mxu0 0.0
    %1085 = vmatpush1.msra.mxu0 0.0
    %1086 = vmatprep.subr.mxu0 0.0
    %1087 = vmatpush1.msra.mxu0 0.0
    %1088 = vmatprep.subr.mxu0 0.0
    %1089 = vmatpush1.msra.mxu0 0.0
    %1090 = vmatprep.subr.mxu0 0.0
    %1091 = vmatpush1.msra.mxu0 0.0
    %1092 = vmatprep.subr.mxu0 0.0
    %1093 = vmatpush1.msra.mxu0 0.0
    %1094 = vmatprep.subr.mxu0 0.0
    %1095 = vmatpush1.msra.mxu0 0.0
    %1096 = vmatprep.subr.mxu0 0.0
    %1097 = vmatpush1.msra.mxu0 0.0
    %1098 = vmatprep.subr.mxu0 0.0
    %1099 = vmatpush1.msra.mxu0 0.0
    %1100 = vmatprep.subr.mxu0 0.0
    %1101 = vmatpush1.msra.mxu0 0.0
    %1102 = vmatprep.subr.mxu0 0.0
    %1103 = vmatpush1.msra.mxu0 0.0
    %1104 = vmatprep.subr.mxu0 0.0
    %1105 = vmatpush1.msra.mxu0 0.0
    %1106 = vmatprep.subr.mxu0 0.0
    %1107 = vmatpush1.msra.mxu0 0.0
    %1108 = vmatprep.subr.mxu0 0.0
    %1109 = vmatpush1.msra.mxu0 0.0
    %1110 = vmatprep.subr.mxu0 0.0
    %1111 = vmatpush1.msra.mxu0 0.0
    %1112 = vmatprep.subr.mxu0 0.0
    %1113 = vmatpush1.msra.mxu0 0.0
    %1114 = vmatprep.subr.mxu0 0.0
    %1115 = vmatpush1.msra.mxu0 0.0
    %1116 = vmatprep.subr.mxu0 0.0
    %1117 = vmatpush1.msra.mxu0 0.0
    %1118 = vmatprep.subr.mxu0 0.0
    %1119 = vmatpush1.msra.mxu0 0.0
    %1120 = vmatprep.subr.mxu0 0.0
    %1121 = vmatpush1.msra.mxu0 0.0
    %1122 = vmatprep.subr.mxu0 0.0
    %1123 = vmatpush1.msra.mxu0 0.0
    %1124 = vmatprep.mubr.f32.mxu0 0.0
    %1125 = vmatmul.mubr.f32.gmra.mrb[0].mxu0 %v557
    %v1126 = vpop.f32.mrb[0].mxu0
    %v1127 = vadd.f32 0.0, %v1126
    %v1128 = vpop.f32.mrb[0].mxu0
    %1129 = vmatprep.mubr.f32.mxu0 0.0
    %1130 = vmatmul.mubr.f32.gmra.mrb[0].mxu0 %v560
    %v1131 = vpop.f32.mrb[0].mxu0
    %v1132 = vadd.f32 0.0, %v1131
    %v1133 = vpop.f32.mrb[0].mxu0
    %1134 = vdwg.mxu0
    %v1136 = vlaneseq
    %v1137 = vshrl.u32 %v1136, 7
    %v1138 = vsub.s32 0, %v1137
    %v1139 = vrot.slane %v1047, %v1138
    %v1142 = vsel %vm724, %v1127, 0
    %v1145 = vsel %vm724, %v1132, 0
    %1147 = vmatprep.subr.mxu0 0.0
    %1148 = vmatpush1.msra.mxu0 %v1043
    %1149 = vmatprep.subr.mxu0 0.0
    %1150 = vmatpush1.msra.mxu0 %v1044
    %1151 = vmatprep.subr.mxu0 0.0
    %1152 = vmatpush1.msra.mxu0 %v1045
    %1153 = vmatprep.subr.mxu0 0.0
    %1154 = vmatpush1.msra.mxu0 %v1046
    %1155 = vmatprep.subr.mxu0 0.0
    %1156 = vmatpush1.msra.mxu0 0.0
    %1157 = vmatprep.subr.mxu0 0.0
    %1158 = vmatpush1.msra.mxu0 0.0
    %1159 = vmatprep.subr.mxu0 0.0
    %1160 = vmatpush1.msra.mxu0 0.0
    %1161 = vmatprep.subr.mxu0 0.0
    %1162 = vmatpush1.msra.mxu0 0.0
    %1163 = vmatprep.subr.mxu0 0.0
    %1164 = vmatpush1.msra.mxu0 0.0
    %1165 = vmatprep.subr.mxu0 0.0
    %1166 = vmatpush1.msra.mxu0 0.0
    %1167 = vmatprep.subr.mxu0 0.0
    %1168 = vmatpush1.msra.mxu0 0.0
    %1169 = vmatprep.subr.mxu0 0.0
    %1170 = vmatpush1.msra.mxu0 0.0
    %1171 = vmatprep.subr.mxu0 0.0
    %1172 = vmatpush1.msra.mxu0 0.0
    %1173 = vmatprep.subr.mxu0 0.0
    %1174 = vmatpush1.msra.mxu0 0.0
    %1175 = vmatprep.subr.mxu0 0.0
    %1176 = vmatpush1.msra.mxu0 0.0
    %1177 = vmatprep.subr.mxu0 0.0
    %1178 = vmatpush1.msra.mxu0 0.0
    %1179 = vmatprep.subr.mxu0 0.0
    %1180 = vmatpush1.msra.mxu0 0.0
    %1181 = vmatprep.subr.mxu0 0.0
    %1182 = vmatpush1.msra.mxu0 0.0
    %1183 = vmatprep.subr.mxu0 0.0
    %1184 = vmatpush1.msra.mxu0 0.0
    %1185 = vmatprep.subr.mxu0 0.0
    %1186 = vmatpush1.msra.mxu0 0.0
    %1187 = vmatprep.subr.mxu0 0.0
    %1188 = vmatpush1.msra.mxu0 0.0
    %1189 = vmatprep.subr.mxu0 0.0
    %1190 = vmatpush1.msra.mxu0 0.0
    %1191 = vmatprep.subr.mxu0 0.0
    %1192 = vmatpush1.msra.mxu0 0.0
    %1193 = vmatprep.subr.mxu0 0.0
    %1194 = vmatpush1.msra.mxu0 0.0
    %1195 = vmatprep.subr.mxu0 0.0
    %1196 = vmatpush1.msra.mxu0 0.0
    %1197 = vmatprep.subr.mxu0 0.0
    %1198 = vmatpush1.msra.mxu0 0.0
    %1199 = vmatprep.subr.mxu0 0.0
    %1200 = vmatpush1.msra.mxu0 0.0
    %1201 = vmatprep.subr.mxu0 0.0
    %1202 = vmatpush1.msra.mxu0 0.0
    %1203 = vmatprep.subr.mxu0 0.0
    %1204 = vmatpush1.msra.mxu0 0.0
    %1205 = vmatprep.subr.mxu0 0.0
    %1206 = vmatpush1.msra.mxu0 0.0
    %1207 = vmatprep.subr.mxu0 0.0
    %1208 = vmatpush1.msra.mxu0 0.0
    %1209 = vmatprep.subr.mxu0 0.0
    %1210 = vmatpush1.msra.mxu0 0.0
    %1211 = vmatprep.mubr.f32.mxu0 0.0
    %1212 = vmatmul.mubr.f32.gmra.mrb[0].mxu0 %v1142
    %v1213 = vpop.f32.mrb[0].mxu0
    %v1214 = vadd.f32 %v1139, %v1213
    %v1215 = vpop.f32.mrb[0].mxu0
    %1216 = vmatprep.mubr.f32.mxu0 0.0
    %1217 = vmatmul.mubr.f32.gmra.mrb[0].mxu0 %v1145
    %v1218 = vpop.f32.mrb[0].mxu0
    %v1219 = vadd.f32 %v1139, %v1218
    %v1220 = vpop.f32.mrb[0].mxu0
    %1221 = vdwg.mxu0
    %v1222 = vsel %vm724, %v1214, 0.0
    %v1223 = vsel %vm724, %v1219, 0.0
    %v1224 = vadd.f32 %v1222, %v1223
    %v1225 = vrot.slane %v1224, 4
    %v1226 = vadd.f32 %v1224, %v1225
    %v1227 = vrot.slane %v1226, 2
    %v1228 = vadd.f32 %v1226, %v1227
    %v1229 = vrot.slane %v1228, 1
    %v1230 = vadd.f32 %v1228, %v1229
    %v1231 = vmul.f32 %v1230, %v734
    %v1232 = vsub.f32 %v1214, %v1231
    %v1233 = vsub.f32 %v1219, %v1231
    %v1234 = vmul.f32 %v1232, %v1232
    %v1235 = vmul.f32 %v1233, %v1233
    %v1236 = vsel %vm724, %v1234, 0.0
    %v1237 = vsel %vm724, %v1235, 0.0
    %v1238 = vadd.f32 %v1236, %v1237
    %v1239 = vrot.slane %v1238, 4
    %v1240 = vadd.f32 %v1238, %v1239
    %v1241 = vrot.slane %v1240, 2
    %v1242 = vadd.f32 %v1240, %v1241
    %v1243 = vrot.slane %v1242, 1
    %v1244 = vadd.f32 %v1242, %v1243
    %v1245 = vmul.f32 %v1244, %v734
    %v1246 = vadd.f32 %v1245, 32.0
    %v1247 = vrsqrt.pop %v1246
    %v1248 = vmul.f32 %v1232, %v1247
    %v1249 = vmul.f32 %v1233, %v1247
    %v1251 = vlaneseq
    %v1252 = vshrl.u32 %v1251, 7
    %v1253 = vsub.s32 0, %v1252
    %v1254 = vrot.slane %v1048, %v1253
    %v1256 = vmul.f32 %v1248, %v1254
    %v1257 = vmul.f32 %v1249, %v1254
    %v1259 = vlaneseq
    %v1260 = vshrl.u32 %v1259, 7
    %v1261 = vsub.s32 0, %v1260
    %v1262 = vrot.slane %v1049, %v1261
    %v1264 = vadd.f32 %v1256, %v1262
    %v1265 = vadd.f32 %v1257, %v1262
    %v1266 = vmax.f32 %v1264, 0.0
    %v1267 = vmax.f32 %v1265, 0.0
    %v1269 = vlaneseq
    %v1270 = vshrl.u32 %v1269, 7
    %v1271 = vsub.s32 0, %v1270
    %v1272 = vrot.slane %v1054, %v1271
    %v1275 = vsel %vm724, %v968, 0
    %v1278 = vsel %vm724, %v969, 0
    %1280 = vmatprep.subr.mxu0 0.0
    %1281 = vmatpush1.msra.mxu0 %v1050
    %1282 = vmatprep.subr.mxu0 0.0
    %1283 = vmatpush1.msra.mxu0 %v1051
    %1284 = vmatprep.subr.mxu0 0.0
    %1285 = vmatpush1.msra.mxu0 %v1052
    %1286 = vmatprep.subr.mxu0 0.0
    %1287 = vmatpush1.msra.mxu0 %v1053
    %1288 = vmatprep.subr.mxu0 0.0
    %1289 = vmatpush1.msra.mxu0 0.0
    %1290 = vmatprep.subr.mxu0 0.0
    %1291 = vmatpush1.msra.mxu0 0.0
    %1292 = vmatprep.subr.mxu0 0.0
    %1293 = vmatpush1.msra.mxu0 0.0
    %1294 = vmatprep.subr.mxu0 0.0
    %1295 = vmatpush1.msra.mxu0 0.0
    %1296 = vmatprep.subr.mxu0 0.0
    %1297 = vmatpush1.msra.mxu0 0.0
    %1298 = vmatprep.subr.mxu0 0.0
    %1299 = vmatpush1.msra.mxu0 0.0
    %1300 = vmatprep.subr.mxu0 0.0
    %1301 = vmatpush1.msra.mxu0 0.0
    %1302 = vmatprep.subr.mxu0 0.0
    %1303 = vmatpush1.msra.mxu0 0.0
    %1304 = vmatprep.subr.mxu0 0.0
    %1305 = vmatpush1.msra.mxu0 0.0
    %1306 = vmatprep.subr.mxu0 0.0
    %1307 = vmatpush1.msra.mxu0 0.0
    %1308 = vmatprep.subr.mxu0 0.0
    %1309 = vmatpush1.msra.mxu0 0.0
    %1310 = vmatprep.subr.mxu0 0.0
    %1311 = vmatpush1.msra.mxu0 0.0
    %1312 = vmatprep.subr.mxu0 0.0
    %1313 = vmatpush1.msra.mxu0 0.0
    %1314 = vmatprep.subr.mxu0 0.0
    %1315 = vmatpush1.msra.mxu0 0.0
    %1316 = vmatprep.subr.mxu0 0.0
    %1317 = vmatpush1.msra.mxu0 0.0
    %1318 = vmatprep.subr.mxu0 0.0
    %1319 = vmatpush1.msra.mxu0 0.0
    %1320 = vmatprep.subr.mxu0 0.0
    %1321 = vmatpush1.msra.mxu0 0.0
    %1322 = vmatprep.subr.mxu0 0.0
    %1323 = vmatpush1.msra.mxu0 0.0
    %1324 = vmatprep.subr.mxu0 0.0
    %1325 = vmatpush1.msra.mxu0 0.0
    %1326 = vmatprep.subr.mxu0 0.0
    %1327 = vmatpush1.msra.mxu0 0.0
    %1328 = vmatprep.subr.mxu0 0.0
    %1329 = vmatpush1.msra.mxu0 0.0
    %1330 = vmatprep.subr.mxu0 0.0
    %1331 = vmatpush1.msra.mxu0 0.0
    %1332 = vmatprep.subr.mxu0 0.0
    %1333 = vmatpush1.msra.mxu0 0.0
    %1334 = vmatprep.subr.mxu0 0.0
    %1335 = vmatpush1.msra.mxu0 0.0
    %1336 = vmatprep.subr.mxu0 0.0
    %1337 = vmatpush1.msra.mxu0 0.0
    %1338 = vmatprep.subr.mxu0 0.0
    %1339 = vmatpush1.msra.mxu0 0.0
    %1340 = vmatprep.subr.mxu0 0.0
    %1341 = vmatpush1.msra.mxu0 0.0
    %1342 = vmatprep.subr.mxu0 0.0
    %1343 = vmatpush1.msra.mxu0 0.0
    %1344 = vmatprep.mubr.f32.mxu0 0.0
    %1345 = vmatmul.mubr.f32.gmra.mrb[0].mxu0 %v1275
    %v1346 = vpop.f32.mrb[0].mxu0
    %v1347 = vadd.f32 %v1272, %v1346
    %v1348 = vpop.f32.mrb[0].mxu0
    %1349 = vmatprep.mubr.f32.mxu0 0.0
    %1350 = vmatmul.mubr.f32.gmra.mrb[0].mxu0 %v1278
    %v1351 = vpop.f32.mrb[0].mxu0
    %v1352 = vadd.f32 %v1272, %v1351
    %v1353 = vpop.f32.mrb[0].mxu0
    %1354 = vdwg.mxu0
    %v1356 = vsel %vm724, %v1266, 0
    %v1359 = vsel %vm724, %v1267, 0
    %1361 = vmatprep.subr.mxu0 0.0
    %1362 = vmatpush1.msra.mxu0 %v1055
    %1363 = vmatprep.subr.mxu0 0.0
    %1364 = vmatpush1.msra.mxu0 %v1056
    %1365 = vmatprep.subr.mxu0 0.0
    %1366 = vmatpush1.msra.mxu0 %v1057
    %1367 = vmatprep.subr.mxu0 0.0
    %1368 = vmatpush1.msra.mxu0 %v1058
    %1369 = vmatprep.subr.mxu0 0.0
    %1370 = vmatpush1.msra.mxu0 0.0
    %1371 = vmatprep.subr.mxu0 0.0
    %1372 = vmatpush1.msra.mxu0 0.0
    %1373 = vmatprep.subr.mxu0 0.0
    %1374 = vmatpush1.msra.mxu0 0.0
    %1375 = vmatprep.subr.mxu0 0.0
    %1376 = vmatpush1.msra.mxu0 0.0
    %1377 = vmatprep.subr.mxu0 0.0
    %1378 = vmatpush1.msra.mxu0 0.0
    %1379 = vmatprep.subr.mxu0 0.0
    %1380 = vmatpush1.msra.mxu0 0.0
    %1381 = vmatprep.subr.mxu0 0.0
    %1382 = vmatpush1.msra.mxu0 0.0
    %1383 = vmatprep.subr.mxu0 0.0
    %1384 = vmatpush1.msra.mxu0 0.0
    %1385 = vmatprep.subr.mxu0 0.0
    %1386 = vmatpush1.msra.mxu0 0.0
    %1387 = vmatprep.subr.mxu0 0.0
    %1388 = vmatpush1.msra.mxu0 0.0
    %1389 = vmatprep.subr.mxu0 0.0
    %1390 = vmatpush1.msra.mxu0 0.0
    %1391 = vmatprep.subr.mxu0 0.0
    %1392 = vmatpush1.msra.mxu0 0.0
    %1393 = vmatprep.subr.mxu0 0.0
    %1394 = vmatpush1.msra.mxu0 0.0
    %1395 = vmatprep.subr.mxu0 0.0
    %1396 = vmatpush1.msra.mxu0 0.0
    %1397 = vmatprep.subr.mxu0 0.0
    %1398 = vmatpush1.msra.mxu0 0.0
    %1399 = vmatprep.subr.mxu0 0.0
    %1400 = vmatpush1.msra.mxu0 0.0
    %1401 = vmatprep.subr.mxu0 0.0
    %1402 = vmatpush1.msra.mxu0 0.0
    %1403 = vmatprep.subr.mxu0 0.0
    %1404 = vmatpush1.msra.mxu0 0.0
    %1405 = vmatprep.subr.mxu0 0.0
    %1406 = vmatpush1.msra.mxu0 0.0
    %1407 = vmatprep.subr.mxu0 0.0
    %1408 = vmatpush1.msra.mxu0 0.0
    %1409 = vmatprep.subr.mxu0 0.0
    %1410 = vmatpush1.msra.mxu0 0.0
    %1411 = vmatprep.subr.mxu0 0.0
    %1412 = vmatpush1.msra.mxu0 0.0
    %1413 = vmatprep.subr.mxu0 0.0
    %1414 = vmatpush1.msra.mxu0 0.0
    %1415 = vmatprep.subr.mxu0 0.0
    %1416 = vmatpush1.msra.mxu0 0.0
    %1417 = vmatprep.subr.mxu0 0.0
    %1418 = vmatpush1.msra.mxu0 0.0
    %1419 = vmatprep.subr.mxu0 0.0
    %1420 = vmatpush1.msra.mxu0 0.0
    %1421 = vmatprep.subr.mxu0 0.0
    %1422 = vmatpush1.msra.mxu0 0.0
    %1423 = vmatprep.subr.mxu0 0.0
    %1424 = vmatpush1.msra.mxu0 0.0
    %1425 = vmatprep.mubr.f32.mxu0 0.0
    %1426 = vmatmul.mubr.f32.gmra.mrb[0].mxu0 %v1356
    %v1427 = vpop.f32.mrb[0].mxu0
    %v1428 = vadd.f32 0.0, %v1427
    %v1429 = vpop.f32.mrb[0].mxu0
    %1430 = vmatprep.mubr.f32.mxu0 0.0
    %1431 = vmatmul.mubr.f32.gmra.mrb[0].mxu0 %v1359
    %v1432 = vpop.f32.mrb[0].mxu0
    %v1433 = vadd.f32 0.0, %v1432
    %v1434 = vpop.f32.mrb[0].mxu0
    %1435 = vdwg.mxu0
    %v1436 = vadd.f32 %v1347, %v1428
    %v1437 = vadd.f32 %v1352, %v1433
    %v1439 = vlaneseq
    %v1440 = vshrl.u32 %v1439, 7
    %v1441 = vsub.s32 0, %v1440
    %v1442 = vrot.slane %v1059, %v1441
    %v1444 = vadd.f32 %v1436, %v1442
    %v1445 = vadd.f32 %v1437, %v1442
    %v1446 = vxor.u32 %v1444, 2147483648
    %v1447 = vxor.u32 %v1445, 2147483648
    %v1448 = vmul.f32 %v1446, 1.442695
    %v1449 = vpow.pop %v1448
    %v1450 = vmul.f32 %v1447, 1.442695
    %v1451 = vpow.pop %v1450
    %v1452 = vadd.f32 %v1449, 1.0
    %v1453 = vadd.f32 %v1451, 1.0
    %v1454 = vrcp.pop %v1452
    %v1455 = vmul.f32 1.0, %v1454
    %v1456 = vrcp.pop %v1453
    %v1457 = vmul.f32 1.0, %v1456
    %v1458 = vmul.f32 %v1455, %v1266
    %v1459 = vmul.f32 %v1457, %v1267
    %v1460 = vsub.f32 1.0, %v1455
    %v1461 = vsub.f32 1.0, %v1457
    %v1462 = vmul.f32 %v1460, %v968
    %v1463 = vmul.f32 %v1461, %v969
    %v1464 = vadd.f32 %v1458, %v1462
    %v1465 = vadd.f32 %v1459, %v1463
    %1466 = vmatprep.subr.mxu0 0.0
    %1467 = vmatpush1.msra.mxu0 %v1464
    %1468 = vmatprep.subr.mxu0 0.0
    %1469 = vmatpush1.msra.mxu0 %v1465
    %1470 = vmatprep.subr.mxu0 0.0
    %1471 = vmatpush1.msra.mxu0 0.0
    %1472 = vmatprep.subr.mxu0 0.0
    %1473 = vmatpush1.msra.mxu0 0.0
    %1474 = vmatprep.subr.mxu0 0.0
    %1475 = vmatpush1.msra.mxu0 0.0
    %1476 = vmatprep.subr.mxu0 0.0
    %1477 = vmatpush1.msra.mxu0 0.0
    %1478 = vmatprep.subr.mxu0 0.0
    %1479 = vmatpush1.msra.mxu0 0.0
    %1480 = vmatprep.subr.mxu0 0.0
    %1481 = vmatpush1.msra.mxu0 0.0
    %1482 = vmatprep.subr.mxu0 0.0
    %1483 = vmatpush1.msra.mxu0 0.0
    %1484 = vmatprep.subr.mxu0 0.0
    %1485 = vmatpush1.msra.mxu0 0.0
    %1486 = vmatprep.subr.mxu0 0.0
    %1487 = vmatpush1.msra.mxu0 0.0
    %1488 = vmatprep.subr.mxu0 0.0
    %1489 = vmatpush1.msra.mxu0 0.0
    %1490 = vmatprep.subr.mxu0 0.0
    %1491 = vmatpush1.msra.mxu0 0.0
    %1492 = vmatprep.subr.mxu0 0.0
    %1493 = vmatpush1.msra.mxu0 0.0
    %1494 = vmatprep.subr.mxu0 0.0
    %1495 = vmatpush1.msra.mxu0 0.0
    %1496 = vmatprep.subr.mxu0 0.0
    %1497 = vmatpush1.msra.mxu0 0.0
    %1498 = vmatprep.subr.mxu0 0.0
    %1499 = vmatpush1.msra.mxu0 0.0
    %1500 = vmatprep.subr.mxu0 0.0
    %1501 = vmatpush1.msra.mxu0 0.0
    %1502 = vmatprep.subr.mxu0 0.0
    %1503 = vmatpush1.msra.mxu0 0.0
    %1504 = vmatprep.subr.mxu0 0.0
    %1505 = vmatpush1.msra.mxu0 0.0
    %1506 = vmatprep.subr.mxu0 0.0
    %1507 = vmatpush1.msra.mxu0 0.0
    %1508 = vmatprep.subr.mxu0 0.0
    %1509 = vmatpush1.msra.mxu0 0.0
    %1510 = vmatprep.subr.mxu0 0.0
    %1511 = vmatpush1.msra.mxu0 0.0
    %1512 = vmatprep.subr.mxu0 0.0
    %1513 = vmatpush1.msra.mxu0 0.0
    %1514 = vmatprep.subr.mxu0 0.0
    %1515 = vmatpush1.msra.mxu0 0.0
    %1516 = vmatprep.subr.mxu0 0.0
    %1517 = vmatpush1.msra.mxu0 0.0
    %1518 = vmatprep.subr.mxu0 0.0
    %1519 = vmatpush1.msra.mxu0 0.0
    %1520 = vmatprep.subr.mxu0 0.0
    %1521 = vmatpush1.msra.mxu0 0.0
    %1522 = vmatprep.subr.mxu0 0.0
    %1523 = vmatpush1.msra.mxu0 0.0
    %1524 = vmatprep.subr.mxu0 0.0
    %1525 = vmatpush1.msra.mxu0 0.0
    %1526 = vmatprep.subr.mxu0 0.0
    %1527 = vmatpush1.msra.mxu0 0.0
    %1528 = vmatprep.subr.mxu0 0.0
    %1529 = vmatpush1.msra.mxu0 0.0
    %1530 = vmatprep.mubr.f32.mxu0 0.0
    %1531 = vmatmul.mubr.f32.gmra.mrb[0].mxu0 %v971
    %v1532 = vpop.f32.mrb[0].mxu0
    %v1533 = vadd.f32 0.0, %v1532
    %v1534 = vpop.f32.mrb[0].mxu0
    %1535 = vdwg.mxu0
    %v1536 = vld [vmem:[#allocation28] sm:$0xff]
    %v1537 = vld [vmem:[#allocation28 + $0x8] sm:$0xff]
    %v1538 = vld [vmem:[#allocation28 + $0x10] sm:$0xff]
    %v1539 = vld [vmem:[#allocation28 + $0x18] sm:$0xff]
    %v1540 = vld [vmem:[#allocation29] sm:$0x1]
    %v1541 = vld [vmem:[#allocation31] sm:$0x1]
    %v1542 = vld [vmem:[#allocation32] sm:$0x1]
    %v1543 = vld [vmem:[#allocation34] sm:$0xff]
    %v1544 = vld [vmem:[#allocation34 + $0x8] sm:$0xff]
    %v1545 = vld [vmem:[#allocation34 + $0x10] sm:$0xff]
    %v1546 = vld [vmem:[#allocation34 + $0x18] sm:$0xff]
    %v1547 = vld [vmem:[#allocation35] sm:$0x1]
    %v1548 = vld [vmem:[%s55] sm:$0xff]
    %v1549 = vld [vmem:[%s55 + $0x8] sm:$0xff]
    %v1550 = vld [vmem:[%s55 + $0x10] sm:$0xff]
    %v1551 = vld [vmem:[%s55 + $0x18] sm:$0xff]
    %v1552 = vld [vmem:[%s57] sm:$0x1]
    %1553 = vmatprep.subr.mxu0 0.0
    %1554 = vmatpush1.msra.mxu0 %v1464
    %1555 = vmatprep.subr.mxu0 0.0
    %1556 = vmatpush1.msra.mxu0 %v1465
    %1557 = vmatprep.subr.mxu0 0.0
    %1558 = vmatpush1.msra.mxu0 0.0
    %1559 = vmatprep.subr.mxu0 0.0
    %1560 = vmatpush1.msra.mxu0 0.0
    %1561 = vmatprep.subr.mxu0 0.0
    %1562 = vmatpush1.msra.mxu0 0.0
    %1563 = vmatprep.subr.mxu0 0.0
    %1564 = vmatpush1.msra.mxu0 0.0
    %1565 = vmatprep.subr.mxu0 0.0
    %1566 = vmatpush1.msra.mxu0 0.0
    %1567 = vmatprep.subr.mxu0 0.0
    %1568 = vmatpush1.msra.mxu0 0.0
    %1569 = vmatprep.subr.mxu0 0.0
    %1570 = vmatpush1.msra.mxu0 0.0
    %1571 = vmatprep.subr.mxu0 0.0
    %1572 = vmatpush1.msra.mxu0 0.0
    %1573 = vmatprep.subr.mxu0 0.0
    %1574 = vmatpush1.msra.mxu0 0.0
    %1575 = vmatprep.subr.mxu0 0.0
    %1576 = vmatpush1.msra.mxu0 0.0
    %1577 = vmatprep.subr.mxu0 0.0
    %1578 = vmatpush1.msra.mxu0 0.0
    %1579 = vmatprep.subr.mxu0 0.0
    %1580 = vmatpush1.msra.mxu0 0.0
    %1581 = vmatprep.subr.mxu0 0.0
    %1582 = vmatpush1.msra.mxu0 0.0
    %1583 = vmatprep.subr.mxu0 0.0
    %1584 = vmatpush1.msra.mxu0 0.0
    %1585 = vmatprep.subr.mxu0 0.0
    %1586 = vmatpush1.msra.mxu0 0.0
    %1587 = vmatprep.subr.mxu0 0.0
    %1588 = vmatpush1.msra.mxu0 0.0
    %1589 = vmatprep.subr.mxu0 0.0
    %1590 = vmatpush1.msra.mxu0 0.0
    %1591 = vmatprep.subr.mxu0 0.0
    %1592 = vmatpush1.msra.mxu0 0.0
    %1593 = vmatprep.subr.mxu0 0.0
    %1594 = vmatpush1.msra.mxu0 0.0
    %1595 = vmatprep.subr.mxu0 0.0
    %1596 = vmatpush1.msra.mxu0 0.0
    %1597 = vmatprep.subr.mxu0 0.0
    %1598 = vmatpush1.msra.mxu0 0.0
    %1599 = vmatprep.subr.mxu0 0.0
    %1600 = vmatpush1.msra.mxu0 0.0
    %1601 = vmatprep.subr.mxu0 0.0
    %1602 = vmatpush1.msra.mxu0 0.0
    %1603 = vmatprep.subr.mxu0 0.0
    %1604 = vmatpush1.msra.mxu0 0.0
    %1605 = vmatprep.subr.mxu0 0.0
    %1606 = vmatpush1.msra.mxu0 0.0
    %1607 = vmatprep.subr.mxu0 0.0
    %1608 = vmatpush1.msra.mxu0 0.0
    %1609 = vmatprep.subr.mxu0 0.0
    %1610 = vmatpush1.msra.mxu0 0.0
    %1611 = vmatprep.subr.mxu0 0.0
    %1612 = vmatpush1.msra.mxu0 0.0
    %1613 = vmatprep.subr.mxu0 0.0
    %1614 = vmatpush1.msra.mxu0 0.0
    %1615 = vmatprep.subr.mxu0 0.0
    %1616 = vmatpush1.msra.mxu0 0.0
    %1617 = vmatprep.mubr.f32.mxu0 0.0
    %1618 = vmatmul.mubr.f32.gmra.mrb[0].mxu0 %v557
    %v1619 = vpop.f32.mrb[0].mxu0
    %v1620 = vadd.f32 0.0, %v1619
    %v1621 = vpop.f32.mrb[0].mxu0
    %1622 = vmatprep.mubr.f32.mxu0 0.0
    %1623 = vmatmul.mubr.f32.gmra.mrb[0].mxu0 %v560
    %v1624 = vpop.f32.mrb[0].mxu0
    %v1625 = vadd.f32 0.0, %v1624
    %v1626 = vpop.f32.mrb[0].mxu0
    %1627 = vdwg.mxu0
    %v1629 = vlaneseq
    %v1630 = vshrl.u32 %v1629, 7
    %v1631 = vsub.s32 0, %v1630
    %v1632 = vrot.slane %v1540, %v1631
    %v1635 = vsel %vm724, %v1620, 0
    %v1638 = vsel %vm724, %v1625, 0
    %1640 = vmatprep.subr.mxu0 0.0
    %1641 = vmatpush1.msra.mxu0 %v1536
    %1642 = vmatprep.subr.mxu0 0.0
    %1643 = vmatpush1.msra.mxu0 %v1537
    %1644 = vmatprep.subr.mxu0 0.0
    %1645 = vmatpush1.msra.mxu0 %v1538
    %1646 = vmatprep.subr.mxu0 0.0
    %1647 = vmatpush1.msra.mxu0 %v1539
    %1648 = vmatprep.subr.mxu0 0.0
    %1649 = vmatpush1.msra.mxu0 0.0
    %1650 = vmatprep.subr.mxu0 0.0
    %1651 = vmatpush1.msra.mxu0 0.0
    %1652 = vmatprep.subr.mxu0 0.0
    %1653 = vmatpush1.msra.mxu0 0.0
    %1654 = vmatprep.subr.mxu0 0.0
    %1655 = vmatpush1.msra.mxu0 0.0
    %1656 = vmatprep.subr.mxu0 0.0
    %1657 = vmatpush1.msra.mxu0 0.0
    %1658 = vmatprep.subr.mxu0 0.0
    %1659 = vmatpush1.msra.mxu0 0.0
    %1660 = vmatprep.subr.mxu0 0.0
    %1661 = vmatpush1.msra.mxu0 0.0
    %1662 = vmatprep.subr.mxu0 0.0
    %1663 = vmatpush1.msra.mxu0 0.0
    %1664 = vmatprep.subr.mxu0 0.0
    %1665 = vmatpush1.msra.mxu0 0.0
    %1666 = vmatprep.subr.mxu0 0.0
    %1667 = vmatpush1.msra.mxu0 0.0
    %1668 = vmatprep.subr.mxu0 0.0
    %1669 = vmatpush1.msra.mxu0 0.0
    %1670 = vmatprep.subr.mxu0 0.0
    %1671 = vmatpush1.msra.mxu0 0.0
    %1672 = vmatprep.subr.mxu0 0.0
    %1673 = vmatpush1.msra.mxu0 0.0
    %1674 = vmatprep.subr.mxu0 0.0
    %1675 = vmatpush1.msra.mxu0 0.0
    %1676 = vmatprep.subr.mxu0 0.0
    %1677 = vmatpush1.msra.mxu0 0.0
    %1678 = vmatprep.subr.mxu0 0.0
    %1679 = vmatpush1.msra.mxu0 0.0
    %1680 = vmatprep.subr.mxu0 0.0
    %1681 = vmatpush1.msra.mxu0 0.0
    %1682 = vmatprep.subr.mxu0 0.0
    %1683 = vmatpush1.msra.mxu0 0.0
    %1684 = vmatprep.subr.mxu0 0.0
    %1685 = vmatpush1.msra.mxu0 0.0
    %1686 = vmatprep.subr.mxu0 0.0
    %1687 = vmatpush1.msra.mxu0 0.0
    %1688 = vmatprep.subr.mxu0 0.0
    %1689 = vmatpush1.msra.mxu0 0.0
    %1690 = vmatprep.subr.mxu0 0.0
    %1691 = vmatpush1.msra.mxu0 0.0
    %1692 = vmatprep.subr.mxu0 0.0
    %1693 = vmatpush1.msra.mxu0 0.0
    %1694 = vmatprep.subr.mxu0 0.0
    %1695 = vmatpush1.msra.mxu0 0.0
    %1696 = vmatprep.subr.mxu0 0.0
    %1697 = vmatpush1.msra.mxu0 0.0
    %1698 = vmatprep.subr.mxu0 0.0
    %1699 = vmatpush1.msra.mxu0 0.0
    %1700 = vmatprep.subr.mxu0 0.0
    %1701 = vmatpush1.msra.mxu0 0.0
    %1702 = vmatprep.subr.mxu0 0.0
    %1703 = vmatpush1.msra.mxu0 0.0
    %1704 = vmatprep.mubr.f32.mxu0 0.0
    %1705 = vmatmul.mubr.f32.gmra.mrb[0].mxu0 %v1635
    %v1706 = vpop.f32.mrb[0].mxu0
    %v1707 = vadd.f32 %v1632, %v1706
    %v1708 = vpop.f32.mrb[0].mxu0
    %1709 = vmatprep.mubr.f32.mxu0 0.0
    %1710 = vmatmul.mubr.f32.gmra.mrb[0].mxu0 %v1638
    %v1711 = vpop.f32.mrb[0].mxu0
    %v1712 = vadd.f32 %v1632, %v1711
    %v1713 = vpop.f32.mrb[0].mxu0
    %1714 = vdwg.mxu0
    %v1715 = vsel %vm724, %v1707, 0.0
    %v1716 = vsel %vm724, %v1712, 0.0
    %v1717 = vadd.f32 %v1715, %v1716
    %v1718 = vrot.slane %v1717, 4
    %v1719 = vadd.f32 %v1717, %v1718
    %v1720 = vrot.slane %v1719, 2
    %v1721 = vadd.f32 %v1719, %v1720
    %v1722 = vrot.slane %v1721, 1
    %v1723 = vadd.f32 %v1721, %v1722
    %v1724 = vmul.f32 %v1723, %v734
    %v1725 = vsub.f32 %v1707, %v1724
    %v1726 = vsub.f32 %v1712, %v1724
    %v1727 = vmul.f32 %v1725, %v1725
    %v1728 = vmul.f32 %v1726, %v1726
    %v1729 = vsel %vm724, %v1727, 0.0
    %v1730 = vsel %vm724, %v1728, 0.0
    %v1731 = vadd.f32 %v1729, %v1730
    %v1732 = vrot.slane %v1731, 4
    %v1733 = vadd.f32 %v1731, %v1732
    %v1734 = vrot.slane %v1733, 2
    %v1735 = vadd.f32 %v1733, %v1734
    %v1736 = vrot.slane %v1735, 1
    %v1737 = vadd.f32 %v1735, %v1736
    %v1738 = vmul.f32 %v1737, %v734
    %v1739 = vadd.f32 %v1738, 32.0
    %v1740 = vrsqrt.pop %v1739
    %v1741 = vmul.f32 %v1725, %v1740
    %v1742 = vmul.f32 %v1726, %v1740
    %v1744 = vlaneseq
    %v1745 = vshrl.u32 %v1744, 7
    %v1746 = vsub.s32 0, %v1745
    %v1747 = vrot.slane %v1541, %v1746
    %v1749 = vmul.f32 %v1741, %v1747
    %v1750 = vmul.f32 %v1742, %v1747
    %v1752 = vlaneseq
    %v1753 = vshrl.u32 %v1752, 7
    %v1754 = vsub.s32 0, %v1753
    %v1755 = vrot.slane %v1542, %v1754
    %v1757 = vadd.f32 %v1749, %v1755
    %v1758 = vadd.f32 %v1750, %v1755
    %v1759 = vmax.f32 %v1757, 0.0
    %v1760 = vmax.f32 %v1758, 0.0
    %v1762 = vlaneseq
    %v1763 = vshrl.u32 %v1762, 7
    %v1764 = vsub.s32 0, %v1763
    %v1765 = vrot.slane %v1547, %v1764
    %v1768 = vsel %vm724, %v1464, 0
    %v1771 = vsel %vm724, %v1465, 0
    %1773 = vmatprep.subr.mxu0 0.0
    %1774 = vmatpush1.msra.mxu0 %v1543
    %1775 = vmatprep.subr.mxu0 0.0
    %1776 = vmatpush1.msra.mxu0 %v1544
    %1777 = vmatprep.subr.mxu0 0.0
    %1778 = vmatpush1.msra.mxu0 %v1545
    %1779 = vmatprep.subr.mxu0 0.0
    %1780 = vmatpush1.msra.mxu0 %v1546
    %1781 = vmatprep.subr.mxu0 0.0
    %1782 = vmatpush1.msra.mxu0 0.0
    %1783 = vmatprep.subr.mxu0 0.0
    %1784 = vmatpush1.msra.mxu0 0.0
    %1785 = vmatprep.subr.mxu0 0.0
    %1786 = vmatpush1.msra.mxu0 0.0
    %1787 = vmatprep.subr.mxu0 0.0
    %1788 = vmatpush1.msra.mxu0 0.0
    %1789 = vmatprep.subr.mxu0 0.0
    %1790 = vmatpush1.msra.mxu0 0.0
    %1791 = vmatprep.subr.mxu0 0.0
    %1792 = vmatpush1.msra.mxu0 0.0
    %1793 = vmatprep.subr.mxu0 0.0
    %1794 = vmatpush1.msra.mxu0 0.0
    %1795 = vmatprep.subr.mxu0 0.0
    %1796 = vmatpush1.msra.mxu0 0.0
    %1797 = vmatprep.subr.mxu0 0.0
    %1798 = vmatpush1.msra.mxu0 0.0
    %1799 = vmatprep.subr.mxu0 0.0
    %1800 = vmatpush1.msra.mxu0 0.0
    %1801 = vmatprep.subr.mxu0 0.0
    %1802 = vmatpush1.msra.mxu0 0.0
    %1803 = vmatprep.subr.mxu0 0.0
    %1804 = vmatpush1.msra.mxu0 0.0
    %1805 = vmatprep.subr.mxu0 0.0
    %1806 = vmatpush1.msra.mxu0 0.0
    %1807 = vmatprep.subr.mxu0 0.0
    %1808 = vmatpush1.msra.mxu0 0.0
    %1809 = vmatprep.subr.mxu0 0.0
    %1810 = vmatpush1.msra.mxu0 0.0
    %1811 = vmatprep.subr.mxu0 0.0
    %1812 = vmatpush1.msra.mxu0 0.0
    %1813 = vmatprep.subr.mxu0 0.0
    %1814 = vmatpush1.msra.mxu0 0.0
    %1815 = vmatprep.subr.mxu0 0.0
    %1816 = vmatpush1.msra.mxu0 0.0
    %1817 = vmatprep.subr.mxu0 0.0
    %1818 = vmatpush1.msra.mxu0 0.0
    %1819 = vmatprep.subr.mxu0 0.0
    %1820 = vmatpush1.msra.mxu0 0.0
    %1821 = vmatprep.subr.mxu0 0.0
    %1822 = vmatpush1.msra.mxu0 0.0
    %1823 = vmatprep.subr.mxu0 0.0
    %1824 = vmatpush1.msra.mxu0 0.0
    %1825 = vmatprep.subr.mxu0 0.0
    %1826 = vmatpush1.msra.mxu0 0.0
    %1827 = vmatprep.subr.mxu0 0.0
    %1828 = vmatpush1.msra.mxu0 0.0
    %1829 = vmatprep.subr.mxu0 0.0
    %1830 = vmatpush1.msra.mxu0 0.0
    %1831 = vmatprep.subr.mxu0 0.0
    %1832 = vmatpush1.msra.mxu0 0.0
    %1833 = vmatprep.subr.mxu0 0.0
    %1834 = vmatpush1.msra.mxu0 0.0
    %1835 = vmatprep.subr.mxu0 0.0
    %1836 = vmatpush1.msra.mxu0 0.0
    %1837 = vmatprep.mubr.f32.mxu0 0.0
    %1838 = vmatmul.mubr.f32.gmra.mrb[0].mxu0 %v1768
    %v1839 = vpop.f32.mrb[0].mxu0
    %v1840 = vadd.f32 %v1765, %v1839
    %v1841 = vpop.f32.mrb[0].mxu0
    %1842 = vmatprep.mubr.f32.mxu0 0.0
    %1843 = vmatmul.mubr.f32.gmra.mrb[0].mxu0 %v1771
    %v1844 = vpop.f32.mrb[0].mxu0
    %v1845 = vadd.f32 %v1765, %v1844
    %v1846 = vpop.f32.mrb[0].mxu0
    %1847 = vdwg.mxu0
    %v1849 = vsel %vm724, %v1759, 0
    %v1852 = vsel %vm724, %v1760, 0
    %1854 = vmatprep.subr.mxu0 0.0
    %1855 = vmatpush1.msra.mxu0 %v1548
    %1856 = vmatprep.subr.mxu0 0.0
    %1857 = vmatpush1.msra.mxu0 %v1549
    %1858 = vmatprep.subr.mxu0 0.0
    %1859 = vmatpush1.msra.mxu0 %v1550
    %1860 = vmatprep.subr.mxu0 0.0
    %1861 = vmatpush1.msra.mxu0 %v1551
    %1862 = vmatprep.subr.mxu0 0.0
    %1863 = vmatpush1.msra.mxu0 0.0
    %1864 = vmatprep.subr.mxu0 0.0
    %1865 = vmatpush1.msra.mxu0 0.0
    %1866 = vmatprep.subr.mxu0 0.0
    %1867 = vmatpush1.msra.mxu0 0.0
    %1868 = vmatprep.subr.mxu0 0.0
    %1869 = vmatpush1.msra.mxu0 0.0
    %1870 = vmatprep.subr.mxu0 0.0
    %1871 = vmatpush1.msra.mxu0 0.0
    %1872 = vmatprep.subr.mxu0 0.0
    %1873 = vmatpush1.msra.mxu0 0.0
    %1874 = vmatprep.subr.mxu0 0.0
    %1875 = vmatpush1.msra.mxu0 0.0
    %1876 = vmatprep.subr.mxu0 0.0
    %1877 = vmatpush1.msra.mxu0 0.0
    %1878 = vmatprep.subr.mxu0 0.0
    %1879 = vmatpush1.msra.mxu0 0.0
    %1880 = vmatprep.subr.mxu0 0.0
    %1881 = vmatpush1.msra.mxu0 0.0
    %1882 = vmatprep.subr.mxu0 0.0
    %1883 = vmatpush1.msra.mxu0 0.0
    %1884 = vmatprep.subr.mxu0 0.0
    %1885 = vmatpush1.msra.mxu0 0.0
    %1886 = vmatprep.subr.mxu0 0.0
    %1887 = vmatpush1.msra.mxu0 0.0
    %1888 = vmatprep.subr.mxu0 0.0
    %1889 = vmatpush1.msra.mxu0 0.0
    %1890 = vmatprep.subr.mxu0 0.0
    %1891 = vmatpush1.msra.mxu0 0.0
    %1892 = vmatprep.subr.mxu0 0.0
    %1893 = vmatpush1.msra.mxu0 0.0
    %1894 = vmatprep.subr.mxu0 0.0
    %1895 = vmatpush1.msra.mxu0 0.0
    %1896 = vmatprep.subr.mxu0 0.0
    %1897 = vmatpush1.msra.mxu0 0.0
    %1898 = vmatprep.subr.mxu0 0.0
    %1899 = vmatpush1.msra.mxu0 0.0
    %1900 = vmatprep.subr.mxu0 0.0
    %1901 = vmatpush1.msra.mxu0 0.0
    %1902 = vmatprep.subr.mxu0 0.0
    %1903 = vmatpush1.msra.mxu0 0.0
    %1904 = vmatprep.subr.mxu0 0.0
    %1905 = vmatpush1.msra.mxu0 0.0
    %1906 = vmatprep.subr.mxu0 0.0
    %1907 = vmatpush1.msra.mxu0 0.0
    %1908 = vmatprep.subr.mxu0 0.0
    %1909 = vmatpush1.msra.mxu0 0.0
    %1910 = vmatprep.subr.mxu0 0.0
    %1911 = vmatpush1.msra.mxu0 0.0
    %1912 = vmatprep.subr.mxu0 0.0
    %1913 = vmatpush1.msra.mxu0 0.0
    %1914 = vmatprep.subr.mxu0 0.0
    %1915 = vmatpush1.msra.mxu0 0.0
    %1916 = vmatprep.subr.mxu0 0.0
    %1917 = vmatpush1.msra.mxu0 0.0
    %1918 = vmatprep.mubr.f32.mxu0 0.0
    %1919 = vmatmul.mubr.f32.gmra.mrb[0].mxu0 %v1849
    %v1920 = vpop.f32.mrb[0].mxu0
    %v1921 = vadd.f32 0.0, %v1920
    %v1922 = vpop.f32.mrb[0].mxu0
    %1923 = vmatprep.mubr.f32.mxu0 0.0
    %1924 = vmatmul.mubr.f32.gmra.mrb[0].mxu0 %v1852
    %v1925 = vpop.f32.mrb[0].mxu0
    %v1926 = vadd.f32 0.0, %v1925
    %v1927 = vpop.f32.mrb[0].mxu0
    %1928 = vdwg.mxu0
    %v1929 = vadd.f32 %v1840, %v1921
    %v1930 = vadd.f32 %v1845, %v1926
    %v1932 = vlaneseq
    %v1933 = vshrl.u32 %v1932, 7
    %v1934 = vsub.s32 0, %v1933
    %v1935 = vrot.slane %v1552, %v1934
    %v1937 = vadd.f32 %v1929, %v1935
    %v1938 = vadd.f32 %v1930, %v1935
    %v1939 = vxor.u32 %v1937, 2147483648
    %v1940 = vxor.u32 %v1938, 2147483648
    %v1941 = vmul.f32 %v1939, 1.442695
    %v1942 = vpow.pop %v1941
    %v1943 = vmul.f32 %v1940, 1.442695
    %v1944 = vpow.pop %v1943
    %v1945 = vadd.f32 %v1942, 1.0
    %v1946 = vadd.f32 %v1944, 1.0
    %v1947 = vrcp.pop %v1945
    %v1948 = vmul.f32 1.0, %v1947
    %v1949 = vrcp.pop %v1946
    %v1950 = vmul.f32 1.0, %v1949
    %v1951 = vmul.f32 %v1948, %v1759
    %v1952 = vmul.f32 %v1950, %v1760
    %v1953 = vsub.f32 1.0, %v1948
    %v1954 = vsub.f32 1.0, %v1950
    %v1955 = vmul.f32 %v1953, %v1464
    %v1956 = vmul.f32 %v1954, %v1465
    %v1957 = vadd.f32 %v1951, %v1955
    %v1958 = vadd.f32 %v1952, %v1956
    %1959 = vmatprep.subr.mxu0 0.0
    %1960 = vmatpush1.msra.mxu0 %v1957
    %1961 = vmatprep.subr.mxu0 0.0
    %1962 = vmatpush1.msra.mxu0 %v1958
    %1963 = vmatprep.subr.mxu0 0.0
    %1964 = vmatpush1.msra.mxu0 0.0
    %1965 = vmatprep.subr.mxu0 0.0
    %1966 = vmatpush1.msra.mxu0 0.0
    %1967 = vmatprep.subr.mxu0 0.0
    %1968 = vmatpush1.msra.mxu0 0.0
    %1969 = vmatprep.subr.mxu0 0.0
    %1970 = vmatpush1.msra.mxu0 0.0
    %1971 = vmatprep.subr.mxu0 0.0
    %1972 = vmatpush1.msra.mxu0 0.0
    %1973 = vmatprep.subr.mxu0 0.0
    %1974 = vmatpush1.msra.mxu0 0.0
    %1975 = vmatprep.subr.mxu0 0.0
    %1976 = vmatpush1.msra.mxu0 0.0
    %1977 = vmatprep.subr.mxu0 0.0
    %1978 = vmatpush1.msra.mxu0 0.0
    %1979 = vmatprep.subr.mxu0 0.0
    %1980 = vmatpush1.msra.mxu0 0.0
    %1981 = vmatprep.subr.mxu0 0.0
    %1982 = vmatpush1.msra.mxu0 0.0
    %1983 = vmatprep.subr.mxu0 0.0
    %1984 = vmatpush1.msra.mxu0 0.0
    %1985 = vmatprep.subr.mxu0 0.0
    %1986 = vmatpush1.msra.mxu0 0.0
    %1987 = vmatprep.subr.mxu0 0.0
    %1988 = vmatpush1.msra.mxu0 0.0
    %1989 = vmatprep.subr.mxu0 0.0
    %1990 = vmatpush1.msra.mxu0 0.0
    %1991 = vmatprep.subr.mxu0 0.0
    %1992 = vmatpush1.msra.mxu0 0.0
    %1993 = vmatprep.subr.mxu0 0.0
    %1994 = vmatpush1.msra.mxu0 0.0
    %1995 = vmatprep.subr.mxu0 0.0
    %1996 = vmatpush1.msra.mxu0 0.0
    %1997 = vmatprep.subr.mxu0 0.0
    %1998 = vmatpush1.msra.mxu0 0.0
    %1999 = vmatprep.subr.mxu0 0.0
    %2000 = vmatpush1.msra.mxu0 0.0
    %2001 = vmatprep.subr.mxu0 0.0
    %2002 = vmatpush1.msra.mxu0 0.0
    %2003 = vmatprep.subr.mxu0 0.0
    %2004 = vmatpush1.msra.mxu0 0.0
    %2005 = vmatprep.subr.mxu0 0.0
    %2006 = vmatpush1.msra.mxu0 0.0
    %2007 = vmatprep.subr.mxu0 0.0
    %2008 = vmatpush1.msra.mxu0 0.0
    %2009 = vmatprep.subr.mxu0 0.0
    %2010 = vmatpush1.msra.mxu0 0.0
    %2011 = vmatprep.subr.mxu0 0.0
    %2012 = vmatpush1.msra.mxu0 0.0
    %2013 = vmatprep.subr.mxu0 0.0
    %2014 = vmatpush1.msra.mxu0 0.0
    %2015 = vmatprep.subr.mxu0 0.0
    %2016 = vmatpush1.msra.mxu0 0.0
    %2017 = vmatprep.subr.mxu0 0.0
    %2018 = vmatpush1.msra.mxu0 0.0
    %2019 = vmatprep.subr.mxu0 0.0
    %2020 = vmatpush1.msra.mxu0 0.0
    %2021 = vmatprep.subr.mxu0 0.0
    %2022 = vmatpush1.msra.mxu0 0.0
    %2023 = vmatprep.mubr.f32.mxu0 0.0
    %2024 = vmatmul.mubr.f32.gmra.mrb[0].mxu0 %v971
    %v2025 = vpop.f32.mrb[0].mxu0
    %v2026 = vadd.f32 0.0, %v2025
    %v2027 = vpop.f32.mrb[0].mxu0
    %2028 = vdwg.mxu0
    %v2029 = vld [vmem:[#allocation37] sm:$0xff]
    %v2030 = vld [vmem:[#allocation37 + $0x8] sm:$0xff]
    %v2031 = vld [vmem:[#allocation37 + $0x10] sm:$0xff]
    %v2032 = vld [vmem:[#allocation37 + $0x18] sm:$0xff]
    %v2033 = vld [vmem:[#allocation38] sm:$0xff]
    %v2034 = vld [vmem:[#allocation38 + $0x8] sm:$0xff]
    %v2035 = vld [vmem:[#allocation38 + $0x10] sm:$0xff]
    %v2036 = vld [vmem:[#allocation38 + $0x18] sm:$0xff]
    %v2038 = vsel %vm724, %v1533, 0
    %2040 = vmatprep.subr.mxu0 0.0
    %2041 = vmatpush1.msra.mxu0 %v2033
    %2042 = vmatprep.subr.mxu0 0.0
    %2043 = vmatpush1.msra.mxu0 %v2034
    %2044 = vmatprep.subr.mxu0 0.0
    %2045 = vmatpush1.msra.mxu0 %v2035
    %2046 = vmatprep.subr.mxu0 0.0
    %2047 = vmatpush1.msra.mxu0 %v2036
    %2048 = vmatprep.subr.mxu0 0.0
    %2049 = vmatpush1.msra.mxu0 0.0
    %2050 = vmatprep.subr.mxu0 0.0
    %2051 = vmatpush1.msra.mxu0 0.0
    %2052 = vmatprep.subr.mxu0 0.0
    %2053 = vmatpush1.msra.mxu0 0.0
    %2054 = vmatprep.subr.mxu0 0.0
    %2055 = vmatpush1.msra.mxu0 0.0
    %2056 = vmatprep.subr.mxu0 0.0
    %2057 = vmatpush1.msra.mxu0 0.0
    %2058 = vmatprep.subr.mxu0 0.0
    %2059 = vmatpush1.msra.mxu0 0.0
    %2060 = vmatprep.subr.mxu0 0.0
    %2061 = vmatpush1.msra.mxu0 0.0
    %2062 = vmatprep.subr.mxu0 0.0
    %2063 = vmatpush1.msra.mxu0 0.0
    %2064 = vmatprep.subr.mxu0 0.0
    %2065 = vmatpush1.msra.mxu0 0.0
    %2066 = vmatprep.subr.mxu0 0.0
    %2067 = vmatpush1.msra.mxu0 0.0
    %2068 = vmatprep.subr.mxu0 0.0
    %2069 = vmatpush1.msra.mxu0 0.0
    %2070 = vmatprep.subr.mxu0 0.0
    %2071 = vmatpush1.msra.mxu0 0.0
    %2072 = vmatprep.subr.mxu0 0.0
    %2073 = vmatpush1.msra.mxu0 0.0
    %2074 = vmatprep.subr.mxu0 0.0
    %2075 = vmatpush1.msra.mxu0 0.0
    %2076 = vmatprep.subr.mxu0 0.0
    %2077 = vmatpush1.msra.mxu0 0.0
    %2078 = vmatprep.subr.mxu0 0.0
    %2079 = vmatpush1.msra.mxu0 0.0
    %2080 = vmatprep.subr.mxu0 0.0
    %2081 = vmatpush1.msra.mxu0 0.0
    %2082 = vmatprep.subr.mxu0 0.0
    %2083 = vmatpush1.msra.mxu0 0.0
    %2084 = vmatprep.subr.mxu0 0.0
    %2085 = vmatpush1.msra.mxu0 0.0
    %2086 = vmatprep.subr.mxu0 0.0
    %2087 = vmatpush1.msra.mxu0 0.0
    %2088 = vmatprep.subr.mxu0 0.0
    %2089 = vmatpush1.msra.mxu0 0.0
    %2090 = vmatprep.subr.mxu0 0.0
    %2091 = vmatpush1.msra.mxu0 0.0
    %2092 = vmatprep.subr.mxu0 0.0
    %2093 = vmatpush1.msra.mxu0 0.0
    %2094 = vmatprep.subr.mxu0 0.0
    %2095 = vmatpush1.msra.mxu0 0.0
    %2096 = vmatprep.subr.mxu0 0.0
    %2097 = vmatpush1.msra.mxu0 0.0
    %2098 = vmatprep.subr.mxu0 0.0
    %2099 = vmatpush1.msra.mxu0 0.0
    %2100 = vmatprep.subr.mxu0 0.0
    %2101 = vmatpush1.msra.mxu0 0.0
    %2102 = vmatprep.subr.mxu0 0.0
    %2103 = vmatpush1.msra.mxu0 0.0
    %2104 = vmatprep.mubr.f32.mxu0 0.0
    %2105 = vmatmul.mubr.f32.gmra.mrb[0].mxu0 %v2038
    %v2106 = vpop.f32.mrb[0].mxu0
    %v2107 = vadd.f32 0.0, %v2106
    %v2108 = vpop.f32.mrb[0].mxu0
    %2109 = vdwg.mxu0
    %v2111 = vsel %vm724, %v1040, 0
    %2113 = vmatprep.subr.mxu0 0.0
    %2114 = vmatpush1.msra.mxu0 %v2029
    %2115 = vmatprep.subr.mxu0 0.0
    %2116 = vmatpush1.msra.mxu0 %v2030
    %2117 = vmatprep.subr.mxu0 0.0
    %2118 = vmatpush1.msra.mxu0 %v2031
    %2119 = vmatprep.subr.mxu0 0.0
    %2120 = vmatpush1.msra.mxu0 %v2032
    %2121 = vmatprep.subr.mxu0 0.0
    %2122 = vmatpush1.msra.mxu0 0.0
    %2123 = vmatprep.subr.mxu0 0.0
    %2124 = vmatpush1.msra.mxu0 0.0
    %2125 = vmatprep.subr.mxu0 0.0
    %2126 = vmatpush1.msra.mxu0 0.0
    %2127 = vmatprep.subr.mxu0 0.0
    %2128 = vmatpush1.msra.mxu0 0.0
    %2129 = vmatprep.subr.mxu0 0.0
    %2130 = vmatpush1.msra.mxu0 0.0
    %2131 = vmatprep.subr.mxu0 0.0
    %2132 = vmatpush1.msra.mxu0 0.0
    %2133 = vmatprep.subr.mxu0 0.0
    %2134 = vmatpush1.msra.mxu0 0.0
    %2135 = vmatprep.subr.mxu0 0.0
    %2136 = vmatpush1.msra.mxu0 0.0
    %2137 = vmatprep.subr.mxu0 0.0
    %2138 = vmatpush1.msra.mxu0 0.0
    %2139 = vmatprep.subr.mxu0 0.0
    %2140 = vmatpush1.msra.mxu0 0.0
    %2141 = vmatprep.subr.mxu0 0.0
    %2142 = vmatpush1.msra.mxu0 0.0
    %2143 = vmatprep.subr.mxu0 0.0
    %2144 = vmatpush1.msra.mxu0 0.0
    %2145 = vmatprep.subr.mxu0 0.0
    %2146 = vmatpush1.msra.mxu0 0.0
    %2147 = vmatprep.subr.mxu0 0.0
    %2148 = vmatpush1.msra.mxu0 0.0
    %2149 = vmatprep.subr.mxu0 0.0
    %2150 = vmatpush1.msra.mxu0 0.0
    %2151 = vmatprep.subr.mxu0 0.0
    %2152 = vmatpush1.msra.mxu0 0.0
    %2153 = vmatprep.subr.mxu0 0.0
    %2154 = vmatpush1.msra.mxu0 0.0
    %2155 = vmatprep.subr.mxu0 0.0
    %2156 = vmatpush1.msra.mxu0 0.0
    %2157 = vmatprep.subr.mxu0 0.0
    %2158 = vmatpush1.msra.mxu0 0.0
    %2159 = vmatprep.subr.mxu0 0.0
    %2160 = vmatpush1.msra.mxu0 0.0
    %2161 = vmatprep.subr.mxu0 0.0
    %2162 = vmatpush1.msra.mxu0 0.0
    %2163 = vmatprep.subr.mxu0 0.0
    %2164 = vmatpush1.msra.mxu0 0.0
    %2165 = vmatprep.subr.mxu0 0.0
    %2166 = vmatpush1.msra.mxu0 0.0
    %2167 = vmatprep.subr.mxu0 0.0
    %2168 = vmatpush1.msra.mxu0 0.0
    %2169 = vmatprep.subr.mxu0 0.0
    %2170 = vmatpush1.msra.mxu0 0.0
    %2171 = vmatprep.subr.mxu0 0.0
    %2172 = vmatpush1.msra.mxu0 0.0
    %2173 = vmatprep.subr.mxu0 0.0
    %2174 = vmatpush1.msra.mxu0 0.0
    %2175 = vmatprep.subr.mxu0 0.0
    %2176 = vmatpush1.msra.mxu0 0.0
    %2177 = vmatprep.mubr.f32.mxu0 0.0
    %2178 = vmatmul.mubr.f32.gmra.mrb[0].mxu0 %v2111
    %v2179 = vpop.f32.mrb[0].mxu0
    %v2180 = vadd.f32 %v2107, %v2179
    %v2181 = vpop.f32.mrb[0].mxu0
    %2182 = vdwg.mxu0
    %v2183 = vld [vmem:[#allocation40] sm:$0xff]
    %v2184 = vld [vmem:[#allocation40 + $0x8] sm:$0xff]
    %v2185 = vld [vmem:[#allocation40 + $0x10] sm:$0xff]
    %v2186 = vld [vmem:[#allocation40 + $0x18] sm:$0xff]
    %v2188 = vsel %vm724, %v2026, 0
    %2190 = vmatprep.subr.mxu0 0.0
    %2191 = vmatpush1.msra.mxu0 %v2183
    %2192 = vmatprep.subr.mxu0 0.0
    %2193 = vmatpush1.msra.mxu0 %v2184
    %2194 = vmatprep.subr.mxu0 0.0
    %2195 = vmatpush1.msra.mxu0 %v2185
    %2196 = vmatprep.subr.mxu0 0.0
    %2197 = vmatpush1.msra.mxu0 %v2186
    %2198 = vmatprep.subr.mxu0 0.0
    %2199 = vmatpush1.msra.mxu0 0.0
    %2200 = vmatprep.subr.mxu0 0.0
    %2201 = vmatpush1.msra.mxu0 0.0
    %2202 = vmatprep.subr.mxu0 0.0
    %2203 = vmatpush1.msra.mxu0 0.0
    %2204 = vmatprep.subr.mxu0 0.0
    %2205 = vmatpush1.msra.mxu0 0.0
    %2206 = vmatprep.subr.mxu0 0.0
    %2207 = vmatpush1.msra.mxu0 0.0
    %2208 = vmatprep.subr.mxu0 0.0
    %2209 = vmatpush1.msra.mxu0 0.0
    %2210 = vmatprep.subr.mxu0 0.0
    %2211 = vmatpush1.msra.mxu0 0.0
    %2212 = vmatprep.subr.mxu0 0.0
    %2213 = vmatpush1.msra.mxu0 0.0
    %2214 = vmatprep.subr.mxu0 0.0
    %2215 = vmatpush1.msra.mxu0 0.0
    %2216 = vmatprep.subr.mxu0 0.0
    %2217 = vmatpush1.msra.mxu0 0.0
    %2218 = vmatprep.subr.mxu0 0.0
    %2219 = vmatpush1.msra.mxu0 0.0
    %2220 = vmatprep.subr.mxu0 0.0
    %2221 = vmatpush1.msra.mxu0 0.0
    %2222 = vmatprep.subr.mxu0 0.0
    %2223 = vmatpush1.msra.mxu0 0.0
    %2224 = vmatprep.subr.mxu0 0.0
    %2225 = vmatpush1.msra.mxu0 0.0
    %2226 = vmatprep.subr.mxu0 0.0
    %2227 = vmatpush1.msra.mxu0 0.0
    %2228 = vmatprep.subr.mxu0 0.0
    %2229 = vmatpush1.msra.mxu0 0.0
    %2230 = vmatprep.subr.mxu0 0.0
    %2231 = vmatpush1.msra.mxu0 0.0
    %2232 = vmatprep.subr.mxu0 0.0
    %2233 = vmatpush1.msra.mxu0 0.0
    %2234 = vmatprep.subr.mxu0 0.0
    %2235 = vmatpush1.msra.mxu0 0.0
    %2236 = vmatprep.subr.mxu0 0.0
    %2237 = vmatpush1.msra.mxu0 0.0
    %2238 = vmatprep.subr.mxu0 0.0
    %2239 = vmatpush1.msra.mxu0 0.0
    %2240 = vmatprep.subr.mxu0 0.0
    %2241 = vmatpush1.msra.mxu0 0.0
    %2242 = vmatprep.subr.mxu0 0.0
    %2243 = vmatpush1.msra.mxu0 0.0
    %2244 = vmatprep.subr.mxu0 0.0
    %2245 = vmatpush1.msra.mxu0 0.0
    %2246 = vmatprep.subr.mxu0 0.0
    %2247 = vmatpush1.msra.mxu0 0.0
    %2248 = vmatprep.subr.mxu0 0.0
    %2249 = vmatpush1.msra.mxu0 0.0
    %2250 = vmatprep.subr.mxu0 0.0
    %2251 = vmatpush1.msra.mxu0 0.0
    %2252 = vmatprep.subr.mxu0 0.0
    %2253 = vmatpush1.msra.mxu0 0.0
    %2254 = vmatprep.mubr.f32.mxu0 0.0
    %2255 = vmatmul.mubr.f32.gmra.mrb[0].mxu0 %v2188
    %v2256 = vpop.f32.mrb[0].mxu0
    %v2257 = vadd.f32 0.0, %v2256
    %v2258 = vpop.f32.mrb[0].mxu0
    %2259 = vdwg.mxu0
    %v2260 = vadd.f32 %v2180, %v2257
    %v2261 = vld [vmem:[#allocation7] sm:$0x3]
    %v2262 = vld [vmem:[%s65] sm:$0xf]
    %vm2263 = vcmask 31744
    %v2265 = vsel %vm2263, %v2261, 0
    %vm2267 = vcmask 1043456
    %v2269 = vsel %vm2267, %v2262, 0
    %2271 = vmatprep.subr.mxu0 0.0
    %2272 = vmatpush1.msra.mxu0 %v2269
    %2273 = vmatprep.subr.mxu0 0.0
    %2274 = vmatpush1.msra.mxu0 0.0
    %2275 = vmatprep.subr.mxu0 0.0
    %2276 = vmatpush1.msra.mxu0 0.0
    %2277 = vmatprep.subr.mxu0 0.0
    %2278 = vmatpush1.msra.mxu0 0.0
    %2279 = vmatprep.subr.mxu0 0.0
    %2280 = vmatpush1.msra.mxu0 0.0
    %2281 = vmatprep.subr.mxu0 0.0
    %2282 = vmatpush1.msra.mxu0 0.0
    %2283 = vmatprep.subr.mxu0 0.0
    %2284 = vmatpush1.msra.mxu0 0.0
    %2285 = vmatprep.subr.mxu0 0.0
    %2286 = vmatpush1.msra.mxu0 0.0
    %2287 = vmatprep.subr.mxu0 0.0
    %2288 = vmatpush1.msra.mxu0 0.0
    %2289 = vmatprep.subr.mxu0 0.0
    %2290 = vmatpush1.msra.mxu0 0.0
    %2291 = vmatprep.subr.mxu0 0.0
    %2292 = vmatpush1.msra.mxu0 0.0
    %2293 = vmatprep.subr.mxu0 0.0
    %2294 = vmatpush1.msra.mxu0 0.0
    %2295 = vmatprep.subr.mxu0 0.0
    %2296 = vmatpush1.msra.mxu0 0.0
    %2297 = vmatprep.subr.mxu0 0.0
    %2298 = vmatpush1.msra.mxu0 0.0
    %2299 = vmatprep.subr.mxu0 0.0
    %2300 = vmatpush1.msra.mxu0 0.0
    %2301 = vmatprep.subr.mxu0 0.0
    %2302 = vmatpush1.msra.mxu0 0.0
    %2303 = vmatprep.subr.mxu0 0.0
    %2304 = vmatpush1.msra.mxu0 0.0
    %2305 = vmatprep.subr.mxu0 0.0
    %2306 = vmatpush1.msra.mxu0 0.0
    %2307 = vmatprep.subr.mxu0 0.0
    %2308 = vmatpush1.msra.mxu0 0.0
    %2309 = vmatprep.subr.mxu0 0.0
    %2310 = vmatpush1.msra.mxu0 0.0
    %2311 = vmatprep.subr.mxu0 0.0
    %2312 = vmatpush1.msra.mxu0 0.0
    %2313 = vmatprep.subr.mxu0 0.0
    %2314 = vmatpush1.msra.mxu0 0.0
    %2315 = vmatprep.subr.mxu0 0.0
    %2316 = vmatpush1.msra.mxu0 0.0
    %2317 = vmatprep.subr.mxu0 0.0
    %2318 = vmatpush1.msra.mxu0 0.0
    %2319 = vmatprep.subr.mxu0 0.0
    %2320 = vmatpush1.msra.mxu0 0.0
    %2321 = vmatprep.subr.mxu0 0.0
    %2322 = vmatpush1.msra.mxu0 0.0
    %2323 = vmatprep.subr.mxu0 0.0
    %2324 = vmatpush1.msra.mxu0 0.0
    %2325 = vmatprep.subr.mxu0 0.0
    %2326 = vmatpush1.msra.mxu0 0.0
    %2327 = vmatprep.subr.mxu0 0.0
    %2328 = vmatpush1.msra.mxu0 0.0
    %2329 = vmatprep.subr.mxu0 0.0
    %2330 = vmatpush1.msra.mxu0 0.0
    %2331 = vmatprep.subr.mxu0 0.0
    %2332 = vmatpush1.msra.mxu0 0.0
    %2333 = vmatprep.subr.mxu0 0.0
    %2334 = vmatpush1.msra.mxu0 0.0
    %2335 = vmatprep.mubr.f32.mxu0 0.0
    %2336 = vmatmul.mubr.f32.gmra.mrb[0].mxu0 %v2265
    %v2337 = vpop.f32.mrb[0].mxu0
    %v2338 = vadd.f32 0.0, %v2337
    %v2339 = vpop.f32.mrb[0].mxu0
    %2340 = vdwg.mxu0
    %v2341 = vadd.f32 %v2260, %v2338
    %v2342 = vld [vmem:[%s67] sm:$0x1]
    %v2344 = vlaneseq
    %v2345 = vshrl.u32 %v2344, 7
    %v2346 = vsub.s32 0, %v2345
    %v2347 = vrot.slane %v2342, %v2346
    %v2349 = vadd.f32 %v2341, %v2347
    %v2350 = vmax.f32 %v2349, 0.0
    %v2351 = vld [vmem:[%s69] sm:$0xff]
    %v2352 = vld [vmem:[%s69 + $0x8] sm:$0xff]
    %v2353 = vld [vmem:[%s69 + $0x10] sm:$0xff]
    %v2354 = vld [vmem:[%s69 + $0x18] sm:$0xff]
    %v2355 = vld [vmem:[%s71] sm:$0x1]
    %v2357 = vlaneseq
    %v2358 = vshrl.u32 %v2357, 7
    %v2359 = vsub.s32 0, %v2358
    %v2360 = vrot.slane %v2355, %v2359
    %v2363 = vsel %vm724, %v2350, 0
    %2365 = vmatprep.subr.mxu0 0.0
    %2366 = vmatpush1.msra.mxu0 %v2351
    %2367 = vmatprep.subr.mxu0 0.0
    %2368 = vmatpush1.msra.mxu0 %v2352
    %2369 = vmatprep.subr.mxu0 0.0
    %2370 = vmatpush1.msra.mxu0 %v2353
    %2371 = vmatprep.subr.mxu0 0.0
    %2372 = vmatpush1.msra.mxu0 %v2354
    %2373 = vmatprep.subr.mxu0 0.0
    %2374 = vmatpush1.msra.mxu0 0.0
    %2375 = vmatprep.subr.mxu0 0.0
    %2376 = vmatpush1.msra.mxu0 0.0
    %2377 = vmatprep.subr.mxu0 0.0
    %2378 = vmatpush1.msra.mxu0 0.0
    %2379 = vmatprep.subr.mxu0 0.0
    %2380 = vmatpush1.msra.mxu0 0.0
    %2381 = vmatprep.subr.mxu0 0.0
    %2382 = vmatpush1.msra.mxu0 0.0
    %2383 = vmatprep.subr.mxu0 0.0
    %2384 = vmatpush1.msra.mxu0 0.0
    %2385 = vmatprep.subr.mxu0 0.0
    %2386 = vmatpush1.msra.mxu0 0.0
    %2387 = vmatprep.subr.mxu0 0.0
    %2388 = vmatpush1.msra.mxu0 0.0
    %2389 = vmatprep.subr.mxu0 0.0
    %2390 = vmatpush1.msra.mxu0 0.0
    %2391 = vmatprep.subr.mxu0 0.0
    %2392 = vmatpush1.msra.mxu0 0.0
    %2393 = vmatprep.subr.mxu0 0.0
    %2394 = vmatpush1.msra.mxu0 0.0
    %2395 = vmatprep.subr.mxu0 0.0
    %2396 = vmatpush1.msra.mxu0 0.0
    %2397 = vmatprep.subr.mxu0 0.0
    %2398 = vmatpush1.msra.mxu0 0.0
    %2399 = vmatprep.subr.mxu0 0.0
    %2400 = vmatpush1.msra.mxu0 0.0
    %2401 = vmatprep.subr.mxu0 0.0
    %2402 = vmatpush1.msra.mxu0 0.0
    %2403 = vmatprep.subr.mxu0 0.0
    %2404 = vmatpush1.msra.mxu0 0.0
    %2405 = vmatprep.subr.mxu0 0.0
    %2406 = vmatpush1.msra.mxu0 0.0
    %2407 = vmatprep.subr.mxu0 0.0
    %2408 = vmatpush1.msra.mxu0 0.0
    %2409 = vmatprep.subr.mxu0 0.0
    %2410 = vmatpush1.msra.mxu0 0.0
    %2411 = vmatprep.subr.mxu0 0.0
    %2412 = vmatpush1.msra.mxu0 0.0
    %2413 = vmatprep.subr.mxu0 0.0
    %2414 = vmatpush1.msra.mxu0 0.0
    %2415 = vmatprep.subr.mxu0 0.0
    %2416 = vmatpush1.msra.mxu0 0.0
    %2417 = vmatprep.subr.mxu0 0.0
    %2418 = vmatpush1.msra.mxu0 0.0
    %2419 = vmatprep.subr.mxu0 0.0
    %2420 = vmatpush1.msra.mxu0 0.0
    %2421 = vmatprep.subr.mxu0 0.0
    %2422 = vmatpush1.msra.mxu0 0.0
    %2423 = vmatprep.subr.mxu0 0.0
    %2424 = vmatpush1.msra.mxu0 0.0
    %2425 = vmatprep.subr.mxu0 0.0
    %2426 = vmatpush1.msra.mxu0 0.0
    %2427 = vmatprep.subr.mxu0 0.0
    %2428 = vmatpush1.msra.mxu0 0.0
    %2429 = vmatprep.mubr.f32.mxu0 0.0
    %2430 = vmatmul.mubr.f32.gmra.mrb[0].mxu0 %v2363
    %v2431 = vpop.f32.mrb[0].mxu0
    %v2432 = vadd.f32 %v2360, %v2431
    %v2433 = vpop.f32.mrb[0].mxu0
    %2434 = vdwg.mxu0
    %vm2435 = vcmask 9216
    %2436 = vst.msk [vmem:[#allocation41] sm:$0x3] %vm2435, %v2432
    // Predicated region
    $region246: #{tpu_custom_call.1} parent=1 // pred_check
      _
    $region247: #{tpu_custom_call.1} parent=1 // pred_check_branch
      %2438 = sbr.rel (0) target = $region249
    $region248: #{tpu_custom_call.1} parent=1 // pred_region
      %s2440 = ssub.s32 32, 32
      %2441 = vsyncadd [#allocation4], %s2440
      %s2443 = sshll.u32 [#allocation41], 4
      %s2444 = int_to_ptr.vmem [resolvable:$true] %s2443
      %2446 = dma.vmem_to_hbm [thread:$0]  %s2444, 32, %s73, [#allocation4]
    $region249: #{tpu_custom_call.1} parent=1 // pred_fallthru
      _
    // Predicated region
    $region250: #{tpu_custom_call.1} parent=1 // pred_check
      _
    $region251: #{tpu_custom_call.1} parent=1 // pred_check_branch
      %2448 = sbr.rel (0) target = $region253
    $region252: #{tpu_custom_call.1} parent=1 // pred_region
      %2449 = dma.done [#allocation4], 32
    $region253: #{tpu_custom_call.1} parent=1 // pred_fallthru
      _
    %2450 = vsyncpa [#allocation3], 1
    %2451 = vsyncpa [#allocation6], 1
    %2452 = vsyncpa [#allocation9], 1
    %2453 = vsyncpa [#allocation12], 1
    %2454 = vsyncpa [#allocation15], 1
    %2455 = vsyncpa [#allocation18], 1
    %2456 = vsyncpa [#allocation21], 1
    %2457 = vsyncpa [#allocation24], 1
    %2458 = vsyncpa [#allocation27], 1
    %2459 = vsyncpa [#allocation30], 1
    %2460 = vsyncpa [#allocation33], 1
    %2461 = vsyncpa [#allocation36], 1
    %2462 = vsyncpa [#allocation39], 1
    %2463 = vsyncpa [#allocation4], 1

</llo_original>
